<compile_context>
chip_gen: v6e
topology: v6e:2x2x1
jax: 0.10.0
libtpu: 0.0.40
codegen_flags: <defaults>
</compile_context>

<pallas_src>
import math
import functools

import jax
import jax.numpy as jnp
from jax import lax
from jax.experimental import pallas as pl
from jax.experimental.pallas import tpu as pltpu


def _mha_kernel(x_ref, wq_ref, bq_ref, wk_ref, bk_ref, wv_ref, bv_ref,
                wo_ref, bo_ref, out_ref, *rest,
                S, h, dq, dv, apply_mask, emit_score, compute_dtype):
    if emit_score:
        score_ref, attn_ref = rest
    else:
        (attn_ref,) = rest

    rows = x_ref.shape[0]            # bt * S
    bt = rows // S
    exact = (compute_dtype == jnp.float32)

    x = x_ref[...].astype(compute_dtype)                                   # (bt*S, d_model)

    # ---- fused projections: one MXU matmul each (M = bt*S, K = d_model) ----
    inv_sqrt_dq = 1.0 / math.sqrt(dq)
    q_full = (jnp.dot(x, wq_ref[...], preferred_element_type=jnp.float32)
              + bq_ref[...]) * inv_sqrt_dq                                 # pre-scaled Q
    k_full = jnp.dot(x, wk_ref[...], preferred_element_type=jnp.float32) + bk_ref[...]
    v_full = jnp.dot(x, wv_ref[...], preferred_element_type=jnp.float32) + bv_ref[...]

    if apply_mask:   # static flag: mask and stage == 'train'; built ONCE per grid step
        causal = (lax.broadcasted_iota(jnp.int32, (S, S), 1)
                  <= lax.broadcasted_iota(jnp.int32, (S, S), 0))           # only bool lives on
        neg = jnp.float32(-2 ** 32 + 1)

    # Static loops: bt and h are small; per-head results go straight into VMEM scratch.
    for bi in range(bt):
        r0 = bi * S
        for hi in range(h):
            qh = q_full[r0:r0 + S, hi * dq:(hi + 1) * dq].astype(compute_dtype)
            kh = k_full[r0:r0 + S, hi * dq:(hi + 1) * dq].astype(compute_dtype)
            vh = v_full[r0:r0 + S, hi * dv:(hi + 1) * dv].astype(compute_dtype)

            # QK^T without materializing a transpose (contract dim 1 of both operands).
            s = lax.dot_general(qh, kh, (((1,), (1,)), ((), ())),
                                preferred_element_type=jnp.float32)        # (S, S)
            if emit_score:
                score_ref[hi, bi] = s.astype(score_ref.dtype)              # raw, pre-mask

            if apply_mask:
                s = jnp.where(causal, s, neg)

            # softmax over last dim (f32)
            m = jnp.max(s, axis=-1, keepdims=True)
            e = jnp.exp(s - m)
            l = jnp.sum(e, axis=-1, keepdims=True)
            if exact:
                p = e / l                                    # exact divide on the f32 path
            else:
                p = e * pl.reciprocal(l, approx=True)        # EUP slot on the bf16 path

            attn_ref[r0:r0 + S, hi * dv:(hi + 1) * dv] = jnp.dot(
                p.astype(compute_dtype), vh, preferred_element_type=jnp.float32)

    # ---- single fused output projection over the scratch (K = h*dv) ----
    out_ref[...] = (jnp.dot(attn_ref[...].astype(compute_dtype), wo_ref[...],
                            preferred_element_type=jnp.float32) + bo_ref[...])


def _pick_batch_block(B, S, target_rows=256):
    """Largest divisor of B such that bt*S stays near ~target_rows projection rows."""
    bt = max(1, min(B, max(1, target_rows // max(S, 1))))
    while B % bt:
        bt -= 1
    return max(bt, 1)


def multi_head_attention(x, params, *, h, dq, dv, mask=False, stage='train',
                         compute_dtype=jnp.float32, return_score=True,
                         score_dtype=jnp.float32, batch_block=None):
    B, S, d_model = x.shape
    apply_mask = bool(mask) and (stage == 'train')
    cd = compute_dtype

    bt = batch_block if batch_block is not None else _pick_batch_block(B, S)
    assert B % bt == 0, "batch_block must divide B"
    if (bt * S) % 8 != 0 and bt != B:   # keep the (8,128) block constraint satisfied
        bt = B
    grid = (B // bt,)

    # plain-JAX glue: cast MXU operands to the compute dtype (bf16 halves x/weight HBM
    # traffic and feeds the bf16-native MXU on v5e/v6e/v7x alike); biases stay f32
    # (added post-accumulation). Reshapes here are contiguous (free).
    x2 = x.reshape(B * S, d_model).astype(cd)
    wq = params['wq'].astype(cd)                    # (d_model, h*dq), y = x @ w + b layout
    wk = params['wk'].astype(cd)
    wv = params['wv'].astype(cd)                    # (d_model, h*dv)
    wo = params['wo'].astype(cd)                    # (h*dv, d_model)
    bq = params['bq'].reshape(1, h * dq).astype(jnp.float32)
    bk = params['bk'].reshape(1, h * dq).astype(jnp.float32)
    bv = params['bv'].reshape(1, h * dv).astype(jnp.float32)
    bo = params['bo'].reshape(1, d_model).astype(jnp.float32)

    kernel = functools.partial(_mha_kernel, S=S, h=h, dq=dq, dv=dv,
                               apply_mask=apply_mask, emit_score=return_score,
                               compute_dtype=cd)

    in_specs = [
        pl.BlockSpec((bt * S, d_model), lambda b: (b, 0)),     # x slab (bt batch elems)
        pl.BlockSpec((d_model, h * dq), lambda b: (0, 0)),     # wq (constant index -> no re-DMA)
        pl.BlockSpec((1, h * dq), lambda b: (0, 0)),           # bq
        pl.BlockSpec((d_model, h * dq), lambda b: (0, 0)),     # wk
        pl.BlockSpec((1, h * dq), lambda b: (0, 0)),           # bk
        pl.BlockSpec((d_model, h * dv), lambda b: (0, 0)),     # wv
        pl.BlockSpec((1, h * dv), lambda b: (0, 0)),           # bv
        pl.BlockSpec((h * dv, d_model), lambda b: (0, 0)),     # wo
        pl.BlockSpec((1, d_model), lambda b: (0, 0)),          # bo
    ]

    out_spec_main = pl.BlockSpec((bt * S, d_model), lambda b: (b, 0))
    if return_score:
        out_shape = (jax.ShapeDtypeStruct((B * S, d_model), jnp.float32),
                     jax.ShapeDtypeStruct((h, B, S, S), score_dtype))
        out_specs = [out_spec_main,
                     pl.BlockSpec((h, bt, S, S), lambda b: (0, b, 0, 0))]
    else:
        out_shape = jax.ShapeDtypeStruct((B * S, d_model), jnp.float32)
        out_specs = out_spec_main

    # Scoped-VMEM budget from actual block sizes (x2 for double-buffering), clamped so it
    # never exceeds v7x's 64 MiB physical VMEM.
    cd_b = jnp.dtype(cd).itemsize
    sc_b = jnp.dtype(score_dtype).itemsize
    est = 2 * (bt * S * d_model * cd_b                           # x block
               + cd_b * d_model * (2 * h * dq + 2 * h * dv)      # wq/wk/wv/wo slabs
               + 4 * (2 * h * dq + h * dv + d_model)             # biases
               + 4 * bt * S * d_model)                           # out block
    if return_score:
        est += 2 * sc_b * h * bt * S * S                         # score block
    est += 4 * bt * S * h * dv                                   # attn scratch
    est += 4 * (3 * bt * S * max(h * dq, h * dv) + 4 * S * S)    # q/k/v_full + per-head temps
    vmem_limit = int(min(64 * 2 ** 20, max(32 * 2 ** 20, 2 * est)))

    res = pl.pallas_call(
        kernel,
        out_shape=out_shape,
        grid_spec=pltpu.PrefetchScalarGridSpec(
            num_scalar_prefetch=0,
            grid=grid,                          # one step per batch tile; heads fused inside
            in_specs=in_specs,
            out_specs=out_specs,
            scratch_shapes=[pltpu.VMEM((bt * S, h * dv), jnp.float32)]),
        compiler_params=pltpu.CompilerParams(
            dimension_semantics=("parallel",),
            vmem_limit_bytes=vmem_limit),
    )(x2, wq, bq, wk, bk, wv, bv, wo, bo)

    if return_score:
        out2, score_hb = res
        # (h, B, S, S) -> (h*B, S, S): contiguous reshape, matches torch.cat(chunk(...), 0)
        score = score_hb.reshape(h * B, S, S)
    else:
        out2, score = res, None
    out = out2.reshape(B, S, d_model)
    return out, score


# ----------------------- pure-JAX reference (mirrors the torch code) -----------------------
def ref_mha(x, params, *, h, dq, dv, mask=False, stage='train'):
    Qf = x @ params['wq'] + params['bq']
    Kf = x @ params['wk'] + params['bk']
    Vf = x @ params['wv'] + params['bv']
    Q = jnp.concatenate(jnp.split(Qf, h, axis=-1), axis=0)   # (h*B, S, dq)
    K = jnp.concatenate(jnp.split(Kf, h, axis=-1), axis=0)
    V = jnp.concatenate(jnp.split(Vf, h, axis=-1), axis=0)
    score = jnp.einsum('bsq,btq->bst', Q, K) / math.sqrt(dq)
    raw_score = score
    if mask and stage == 'train':
        S = score.shape[-1]
        tri = jnp.tril(jnp.ones((S, S), jnp.float32))
        score = jnp.where(tri > 0, score, jnp.float32(-2 ** 32 + 1))
    p = jax.nn.softmax(score, axis=-1)
    attn = jnp.einsum('bst,btv->bsv', p, V)                  # (h*B, S, dv)
    heads = jnp.concatenate(jnp.split(attn, h, axis=0), axis=-1)  # (B, S, dv*h)
    out = heads @ params['wo'] + params['bo']
    return out, raw_score


if __name__ == "__main__":
    B, S, d_model = 2, 8, 32
    h, dq, dv = 4, 8, 8

    key = jax.random.PRNGKey(0)
    ks = jax.random.split(key, 9)
    params = {
        'wq': 0.1 * jax.random.normal(ks[0], (d_model, dq * h), jnp.float32),
        'bq': 0.1 * jax.random.normal(ks[1], (dq * h,), jnp.float32),
        'wk': 0.1 * jax.random.normal(ks[2], (d_model, dq * h), jnp.float32),
        'bk': 0.1 * jax.random.normal(ks[3], (dq * h,), jnp.float32),
        'wv': 0.1 * jax.random.normal(ks[4], (d_model, dv * h), jnp.float32),
        'bv': 0.1 * jax.random.normal(ks[5], (dv * h,), jnp.float32),
        'wo': 0.1 * jax.random.normal(ks[6], (dv * h, d_model), jnp.float32),
        'bo': 0.1 * jax.random.normal(ks[7], (d_model,), jnp.float32),
    }
    x = jax.random.normal(ks[8], (B, S, d_model), jnp.float32)

    out_ref, score_ref = ref_mha(x, params, h=h, dq=dq, dv=dv, mask=False, stage='train')
    out_mr, score_mr = ref_mha(x, params, h=h, dq=dq, dv=dv, mask=True, stage='train')

    # ---- f32 compute path (strict check), unmasked ----
    out, score = multi_head_attention(x, params, h=h, dq=dq, dv=dv,
                                      mask=False, stage='train',
                                      compute_dtype=jnp.float32)
    jax.block_until_ready((out, score))
    assert out.shape == (B, S, d_model) and score.shape == (h * B, S, S)
    assert jnp.allclose(score, score_ref, rtol=1e-4, atol=1e-4)
    assert jnp.allclose(out, out_ref, rtol=2e-3, atol=2e-3)

    # ---- f32 compute path, causal mask (train) ----
    out_m, score_m = multi_head_attention(x, params, h=h, dq=dq, dv=dv,
                                          mask=True, stage='train',
                                          compute_dtype=jnp.float32)
    jax.block_until_ready((out_m, score_m))
    assert jnp.allclose(score_m, score_mr, rtol=1e-4, atol=1e-4)
    assert jnp.allclose(out_m, out_mr, rtol=2e-3, atol=2e-3)

    # ---- score-free fast path (skips the O(h*B*S^2) HBM writeback) ----
    out_ns, score_ns = multi_head_attention(x, params, h=h, dq=dq, dv=dv,
                                            mask=False, stage='train',
                                            compute_dtype=jnp.float32,
                                            return_score=False)
    jax.block_until_ready(out_ns)
    assert score_ns is None
    assert jnp.allclose(out_ns, out_ref, rtol=2e-3, atol=2e-3)

    # ---- bf16 MXU-operand path (valid on v5e/v6e/v7x), looser tolerance ----
    out_b, score_b = multi_head_attention(x, params, h=h, dq=dq, dv=dv,
                                          mask=False, stage='train',
                                          compute_dtype=jnp.bfloat16)
    jax.block_until_ready((out_b, score_b))
    assert jnp.allclose(score_b, score_ref, rtol=3e-2, atol=3e-2)
    assert jnp.allclose(out_b, out_ref, rtol=3e-2, atol=3e-2)

    print("KERNEL_OK")
</pallas_src>

<mosaic_0001>
module attributes {stable_mosaic.version = 11 : i64} {
  func.func @_mha_kernel(%arg0: i32, %arg1: memref<16x32xf32, #tpu.memory_space<vmem>>, %arg2: memref<32x32xf32, #tpu.memory_space<vmem>>, %arg3: memref<1x32xf32, #tpu.memory_space<vmem>>, %arg4: memref<32x32xf32, #tpu.memory_space<vmem>>, %arg5: memref<1x32xf32, #tpu.memory_space<vmem>>, %arg6: memref<32x32xf32, #tpu.memory_space<vmem>>, %arg7: memref<1x32xf32, #tpu.memory_space<vmem>>, %arg8: memref<32x32xf32, #tpu.memory_space<vmem>>, %arg9: memref<1x32xf32, #tpu.memory_space<vmem>>, %arg10: memref<16x32xf32, #tpu.memory_space<vmem>>, %arg11: memref<4x2x8x8xf32, #tpu.memory_space<vmem>>, %arg12: memref<16x32xf32, #tpu.memory_space<vmem>>) attributes {dimension_semantics = [#tpu.dimension_semantics<parallel>], iteration_bounds = array<i64: 1>, scalar_prefetch = 0 : i64, scratch_operands = 1 : i64, tpu.core_type = #tpu.core_type<tc>, window_params = [{transform_indices = @transform_0, window_bounds = array<i64: 16, 32>}, {pipeline_mode = #tpu.pipeline_mode<synchronous>, transform_indices = @transform_1, window_bounds = array<i64: 32, 32>}, {pipeline_mode = #tpu.pipeline_mode<synchronous>, transform_indices = @transform_2, window_bounds = array<i64: 1, 32>}, {pipeline_mode = #tpu.pipeline_mode<synchronous>, transform_indices = @transform_3, window_bounds = array<i64: 32, 32>}, {pipeline_mode = #tpu.pipeline_mode<synchronous>, transform_indices = @transform_4, window_bounds = array<i64: 1, 32>}, {pipeline_mode = #tpu.pipeline_mode<synchronous>, transform_indices = @transform_5, window_bounds = array<i64: 32, 32>}, {pipeline_mode = #tpu.pipeline_mode<synchronous>, transform_indices = @transform_6, window_bounds = array<i64: 1, 32>}, {pipeline_mode = #tpu.pipeline_mode<synchronous>, transform_indices = @transform_7, window_bounds = array<i64: 32, 32>}, {pipeline_mode = #tpu.pipeline_mode<synchronous>, transform_indices = @transform_8, window_bounds = array<i64: 1, 32>}, {transform_indices = @transform_9, window_bounds = array<i64: 16, 32>}, {transform_indices = @transform_10, window_bounds = array<i64: 4, 2, 8, 8>}]} {
    %c0 = arith.constant 0 : index
    %c0_0 = arith.constant 0 : index
    %0 = vector.load %arg1[%c0, %c0_0] : memref<16x32xf32, #tpu.memory_space<vmem>>, vector<16x32xf32>
    %c0_1 = arith.constant 0 : index
    %c0_2 = arith.constant 0 : index
    %1 = vector.load %arg2[%c0_1, %c0_2] : memref<32x32xf32, #tpu.memory_space<vmem>>, vector<32x32xf32>
    %cst = arith.constant dense<0.000000e+00> : vector<16x32xf32>
    %2 = tpu.matmul %0, %1, %cst {dimension_numbers = #tpu.dot_dimension_numbers<[1], [0], [0], [1], [0, 0, 1, 1], [], []>} : vector<16x32xf32>, vector<32x32xf32>, vector<16x32xf32> -> vector<16x32xf32>
    %c0_3 = arith.constant 0 : index
    %c0_4 = arith.constant 0 : index
    %3 = vector.load %arg3[%c0_3, %c0_4] : memref<1x32xf32, #tpu.memory_space<vmem>>, vector<1x32xf32>
    %4 = vector.broadcast %3 : vector<1x32xf32> to vector<16x32xf32>
    %5 = arith.addf %2, %4 : vector<16x32xf32>
    %cst_5 = arith.constant 0.353553385 : f32
    %6 = vector.broadcast %cst_5 : f32 to vector<16x32xf32>
    %7 = arith.mulf %5, %6 : vector<16x32xf32>
    %c0_6 = arith.constant 0 : index
    %c0_7 = arith.constant 0 : index
    %8 = vector.load %arg4[%c0_6, %c0_7] : memref<32x32xf32, #tpu.memory_space<vmem>>, vector<32x32xf32>
    %cst_8 = arith.constant dense<0.000000e+00> : vector<16x32xf32>
    %9 = tpu.matmul %0, %8, %cst_8 {dimension_numbers = #tpu.dot_dimension_numbers<[1], [0], [0], [1], [0, 0, 1, 1], [], []>} : vector<16x32xf32>, vector<32x32xf32>, vector<16x32xf32> -> vector<16x32xf32>
    %c0_9 = arith.constant 0 : index
    %c0_10 = arith.constant 0 : index
    %10 = vector.load %arg5[%c0_9, %c0_10] : memref<1x32xf32, #tpu.memory_space<vmem>>, vector<1x32xf32>
    %11 = vector.broadcast %10 : vector<1x32xf32> to vector<16x32xf32>
    %12 = arith.addf %9, %11 : vector<16x32xf32>
    %c0_11 = arith.constant 0 : index
    %c0_12 = arith.constant 0 : index
    %13 = vector.load %arg6[%c0_11, %c0_12] : memref<32x32xf32, #tpu.memory_space<vmem>>, vector<32x32xf32>
    %cst_13 = arith.constant dense<0.000000e+00> : vector<16x32xf32>
    %14 = tpu.matmul %0, %13, %cst_13 {dimension_numbers = #tpu.dot_dimension_numbers<[1], [0], [0], [1], [0, 0, 1, 1], [], []>} : vector<16x32xf32>, vector<32x32xf32>, vector<16x32xf32> -> vector<16x32xf32>
    %c0_14 = arith.constant 0 : index
    %c0_15 = arith.constant 0 : index
    %15 = vector.load %arg7[%c0_14, %c0_15] : memref<1x32xf32, #tpu.memory_space<vmem>>, vector<1x32xf32>
    %16 = vector.broadcast %15 : vector<1x32xf32> to vector<16x32xf32>
    %17 = arith.addf %14, %16 : vector<16x32xf32>
    %18 = vector.extract_strided_slice %7 {offsets = [0, 0], sizes = [8, 8], strides = [1, 1]} : vector<16x32xf32> to vector<8x8xf32>
    %19 = vector.extract_strided_slice %12 {offsets = [0, 0], sizes = [8, 8], strides = [1, 1]} : vector<16x32xf32> to vector<8x8xf32>
    %20 = vector.extract_strided_slice %17 {offsets = [0, 0], sizes = [8, 8], strides = [1, 1]} : vector<16x32xf32> to vector<8x8xf32>
    %cst_16 = arith.constant dense<0.000000e+00> : vector<8x8xf32>
    %21 = tpu.matmul %18, %19, %cst_16 {dimension_numbers = #tpu.dot_dimension_numbers<[1], [1], [0], [0], [0, 0, 1, 0], [], []>} : vector<8x8xf32>, vector<8x8xf32>, vector<8x8xf32> -> vector<8x8xf32>
    %c0_17 = arith.constant 0 : index
    %c0_18 = arith.constant 0 : index
    %c0_19 = arith.constant 0 : index
    %c0_20 = arith.constant 0 : index
    %22 = vector.load %arg11[%c0_17, %c0_18, %c0_19, %c0_20] : memref<4x2x8x8xf32, #tpu.memory_space<vmem>>, vector<1x1x8x8xf32>
    %23 = vector.shape_cast %22 : vector<1x1x8x8xf32> to vector<8x8xf32>
    %24 = vector.shape_cast %21 : vector<8x8xf32> to vector<1x1x8x8xf32>
    tpu.vector_store %arg11[%c0_17, %c0_18, %c0_19, %c0_20], %24 {strides = array<i32>} : memref<4x2x8x8xf32, #tpu.memory_space<vmem>>, vector<1x1x8x8xf32>,
    %cst_21 = arith.constant dense<0xFF800000> : vector<8xf32>
    %25 = vector.multi_reduction <maximumf>, %21, %cst_21 [1] : vector<8x8xf32> to vector<8xf32>
    %26 = vector.shape_cast %25 : vector<8xf32> to vector<8x1xf32>
    %27 = vector.broadcast %26 : vector<8x1xf32> to vector<8x8xf32>
    %28 = arith.subf %21, %27 : vector<8x8xf32>
    %29 = math.exp %28 : vector<8x8xf32>
    %cst_22 = arith.constant dense<0.000000e+00> : vector<8xf32>
    %30 = vector.multi_reduction <add>, %29, %cst_22 [1] : vector<8x8xf32> to vector<8xf32>
    %31 = vector.shape_cast %30 : vector<8xf32> to vector<8x1xf32>
    %32 = vector.broadcast %31 : vector<8x1xf32> to vector<8x8xf32>
    %33 = arith.divf %29, %32 : vector<8x8xf32>
    %cst_23 = arith.constant dense<0.000000e+00> : vector<8x8xf32>
    %34 = tpu.matmul %33, %20, %cst_23 {dimension_numbers = #tpu.dot_dimension_numbers<[1], [0], [0], [1], [0, 0, 1, 1], [], []>} : vector<8x8xf32>, vector<8x8xf32>, vector<8x8xf32> -> vector<8x8xf32>
    %c0_24 = arith.constant 0 : index
    %c0_25 = arith.constant 0 : index
    %35 = vector.load %arg12[%c0_24, %c0_25] : memref<16x32xf32, #tpu.memory_space<vmem>>, vector<8x8xf32>
    tpu.vector_store %arg12[%c0_24, %c0_25], %34 {strides = array<i32>} : memref<16x32xf32, #tpu.memory_space<vmem>>, vector<8x8xf32>,
    %36 = vector.extract_strided_slice %7 {offsets = [0, 8], sizes = [8, 8], strides = [1, 1]} : vector<16x32xf32> to vector<8x8xf32>
    %37 = vector.extract_strided_slice %12 {offsets = [0, 8], sizes = [8, 8], strides = [1, 1]} : vector<16x32xf32> to vector<8x8xf32>
    %38 = vector.extract_strided_slice %17 {offsets = [0, 8], sizes = [8, 8], strides = [1, 1]} : vector<16x32xf32> to vector<8x8xf32>
    %cst_26 = arith.constant dense<0.000000e+00> : vector<8x8xf32>
    %39 = tpu.matmul %36, %37, %cst_26 {dimension_numbers = #tpu.dot_dimension_numbers<[1], [1], [0], [0], [0, 0, 1, 0], [], []>} : vector<8x8xf32>, vector<8x8xf32>, vector<8x8xf32> -> vector<8x8xf32>
    %c1 = arith.constant 1 : index
    %c0_27 = arith.constant 0 : index
    %c0_28 = arith.constant 0 : index
    %c0_29 = arith.constant 0 : index
    %40 = vector.load %arg11[%c1, %c0_27, %c0_28, %c0_29] : memref<4x2x8x8xf32, #tpu.memory_space<vmem>>, vector<1x1x8x8xf32>
    %41 = vector.shape_cast %40 : vector<1x1x8x8xf32> to vector<8x8xf32>
    %42 = vector.shape_cast %39 : vector<8x8xf32> to vector<1x1x8x8xf32>
    tpu.vector_store %arg11[%c1, %c0_27, %c0_28, %c0_29], %42 {strides = array<i32>} : memref<4x2x8x8xf32, #tpu.memory_space<vmem>>, vector<1x1x8x8xf32>,
    %cst_30 = arith.constant dense<0xFF800000> : vector<8xf32>
    %43 = vector.multi_reduction <maximumf>, %39, %cst_30 [1] : vector<8x8xf32> to vector<8xf32>
    %44 = vector.shape_cast %43 : vector<8xf32> to vector<8x1xf32>
    %45 = vector.broadcast %44 : vector<8x1xf32> to vector<8x8xf32>
    %46 = arith.subf %39, %45 : vector<8x8xf32>
    %47 = math.exp %46 : vector<8x8xf32>
    %cst_31 = arith.constant dense<0.000000e+00> : vector<8xf32>
    %48 = vector.multi_reduction <add>, %47, %cst_31 [1] : vector<8x8xf32> to vector<8xf32>
    %49 = vector.shape_cast %48 : vector<8xf32> to vector<8x1xf32>
    %50 = vector.broadcast %49 : vector<8x1xf32> to vector<8x8xf32>
    %51 = arith.divf %47, %50 : vector<8x8xf32>
    %cst_32 = arith.constant dense<0.000000e+00> : vector<8x8xf32>
    %52 = tpu.matmul %51, %38, %cst_32 {dimension_numbers = #tpu.dot_dimension_numbers<[1], [0], [0], [1], [0, 0, 1, 1], [], []>} : vector<8x8xf32>, vector<8x8xf32>, vector<8x8xf32> -> vector<8x8xf32>
    %c0_33 = arith.constant 0 : index
    %c8 = arith.constant 8 : index
    %53 = vector.load %arg12[%c0_33, %c8] : memref<16x32xf32, #tpu.memory_space<vmem>>, vector<8x8xf32>
    tpu.vector_store %arg12[%c0_33, %c8], %52 {strides = array<i32>} : memref<16x32xf32, #tpu.memory_space<vmem>>, vector<8x8xf32>,
    %54 = vector.extract_strided_slice %7 {offsets = [0, 16], sizes = [8, 8], strides = [1, 1]} : vector<16x32xf32> to vector<8x8xf32>
    %55 = vector.extract_strided_slice %12 {offsets = [0, 16], sizes = [8, 8], strides = [1, 1]} : vector<16x32xf32> to vector<8x8xf32>
    %56 = vector.extract_strided_slice %17 {offsets = [0, 16], sizes = [8, 8], strides = [1, 1]} : vector<16x32xf32> to vector<8x8xf32>
    %cst_34 = arith.constant dense<0.000000e+00> : vector<8x8xf32>
    %57 = tpu.matmul %54, %55, %cst_34 {dimension_numbers = #tpu.dot_dimension_numbers<[1], [1], [0], [0], [0, 0, 1, 0], [], []>} : vector<8x8xf32>, vector<8x8xf32>, vector<8x8xf32> -> vector<8x8xf32>
    %c2 = arith.constant 2 : index
    %c0_35 = arith.constant 0 : index
    %c0_36 = arith.constant 0 : index
    %c0_37 = arith.constant 0 : index
    %58 = vector.load %arg11[%c2, %c0_35, %c0_36, %c0_37] : memref<4x2x8x8xf32, #tpu.memory_space<vmem>>, vector<1x1x8x8xf32>
    %59 = vector.shape_cast %58 : vector<1x1x8x8xf32> to vector<8x8xf32>
    %60 = vector.shape_cast %57 : vector<8x8xf32> to vector<1x1x8x8xf32>
    tpu.vector_store %arg11[%c2, %c0_35, %c0_36, %c0_37], %60 {strides = array<i32>} : memref<4x2x8x8xf32, #tpu.memory_space<vmem>>, vector<1x1x8x8xf32>,
    %cst_38 = arith.constant dense<0xFF800000> : vector<8xf32>
    %61 = vector.multi_reduction <maximumf>, %57, %cst_38 [1] : vector<8x8xf32> to vector<8xf32>
    %62 = vector.shape_cast %61 : vector<8xf32> to vector<8x1xf32>
    %63 = vector.broadcast %62 : vector<8x1xf32> to vector<8x8xf32>
    %64 = arith.subf %57, %63 : vector<8x8xf32>
    %65 = math.exp %64 : vector<8x8xf32>
    %cst_39 = arith.constant dense<0.000000e+00> : vector<8xf32>
    %66 = vector.multi_reduction <add>, %65, %cst_39 [1] : vector<8x8xf32> to vector<8xf32>
    %67 = vector.shape_cast %66 : vector<8xf32> to vector<8x1xf32>
    %68 = vector.broadcast %67 : vector<8x1xf32> to vector<8x8xf32>
    %69 = arith.divf %65, %68 : vector<8x8xf32>
    %cst_40 = arith.constant dense<0.000000e+00> : vector<8x8xf32>
    %70 = tpu.matmul %69, %56, %cst_40 {dimension_numbers = #tpu.dot_dimension_numbers<[1], [0], [0], [1], [0, 0, 1, 1], [], []>} : vector<8x8xf32>, vector<8x8xf32>, vector<8x8xf32> -> vector<8x8xf32>
    %c0_41 = arith.constant 0 : index
    %c16 = arith.constant 16 : index
    %71 = vector.load %arg12[%c0_41, %c16] : memref<16x32xf32, #tpu.memory_space<vmem>>, vector<8x8xf32>
    tpu.vector_store %arg12[%c0_41, %c16], %70 {strides = array<i32>} : memref<16x32xf32, #tpu.memory_space<vmem>>, vector<8x8xf32>,
    %72 = vector.extract_strided_slice %7 {offsets = [0, 24], sizes = [8, 8], strides = [1, 1]} : vector<16x32xf32> to vector<8x8xf32>
    %73 = vector.extract_strided_slice %12 {offsets = [0, 24], sizes = [8, 8], strides = [1, 1]} : vector<16x32xf32> to vector<8x8xf32>
    %74 = vector.extract_strided_slice %17 {offsets = [0, 24], sizes = [8, 8], strides = [1, 1]} : vector<16x32xf32> to vector<8x8xf32>
    %cst_42 = arith.constant dense<0.000000e+00> : vector<8x8xf32>
    %75 = tpu.matmul %72, %73, %cst_42 {dimension_numbers = #tpu.dot_dimension_numbers<[1], [1], [0], [0], [0, 0, 1, 0], [], []>} : vector<8x8xf32>, vector<8x8xf32>, vector<8x8xf32> -> vector<8x8xf32>
    %c3 = arith.constant 3 : index
    %c0_43 = arith.constant 0 : index
    %c0_44 = arith.constant 0 : index
    %c0_45 = arith.constant 0 : index
    %76 = vector.load %arg11[%c3, %c0_43, %c0_44, %c0_45] : memref<4x2x8x8xf32, #tpu.memory_space<vmem>>, vector<1x1x8x8xf32>
    %77 = vector.shape_cast %76 : vector<1x1x8x8xf32> to vector<8x8xf32>
    %78 = vector.shape_cast %75 : vector<8x8xf32> to vector<1x1x8x8xf32>
    tpu.vector_store %arg11[%c3, %c0_43, %c0_44, %c0_45], %78 {strides = array<i32>} : memref<4x2x8x8xf32, #tpu.memory_space<vmem>>, vector<1x1x8x8xf32>,
    %cst_46 = arith.constant dense<0xFF800000> : vector<8xf32>
    %79 = vector.multi_reduction <maximumf>, %75, %cst_46 [1] : vector<8x8xf32> to vector<8xf32>
    %80 = vector.shape_cast %79 : vector<8xf32> to vector<8x1xf32>
    %81 = vector.broadcast %80 : vector<8x1xf32> to vector<8x8xf32>
    %82 = arith.subf %75, %81 : vector<8x8xf32>
    %83 = math.exp %82 : vector<8x8xf32>
    %cst_47 = arith.constant dense<0.000000e+00> : vector<8xf32>
    %84 = vector.multi_reduction <add>, %83, %cst_47 [1] : vector<8x8xf32> to vector<8xf32>
    %85 = vector.shape_cast %84 : vector<8xf32> to vector<8x1xf32>
    %86 = vector.broadcast %85 : vector<8x1xf32> to vector<8x8xf32>
    %87 = arith.divf %83, %86 : vector<8x8xf32>
    %cst_48 = arith.constant dense<0.000000e+00> : vector<8x8xf32>
    %88 = tpu.matmul %87, %74, %cst_48 {dimension_numbers = #tpu.dot_dimension_numbers<[1], [0], [0], [1], [0, 0, 1, 1], [], []>} : vector<8x8xf32>, vector<8x8xf32>, vector<8x8xf32> -> vector<8x8xf32>
    %c0_49 = arith.constant 0 : index
    %c24 = arith.constant 24 : index
    %89 = vector.load %arg12[%c0_49, %c24] : memref<16x32xf32, #tpu.memory_space<vmem>>, vector<8x8xf32>
    tpu.vector_store %arg12[%c0_49, %c24], %88 {strides = array<i32>} : memref<16x32xf32, #tpu.memory_space<vmem>>, vector<8x8xf32>,
    %90 = vector.extract_strided_slice %7 {offsets = [8, 0], sizes = [8, 8], strides = [1, 1]} : vector<16x32xf32> to vector<8x8xf32>
    %91 = vector.extract_strided_slice %12 {offsets = [8, 0], sizes = [8, 8], strides = [1, 1]} : vector<16x32xf32> to vector<8x8xf32>
    %92 = vector.extract_strided_slice %17 {offsets = [8, 0], sizes = [8, 8], strides = [1, 1]} : vector<16x32xf32> to vector<8x8xf32>
    %cst_50 = arith.constant dense<0.000000e+00> : vector<8x8xf32>
    %93 = tpu.matmul %90, %91, %cst_50 {dimension_numbers = #tpu.dot_dimension_numbers<[1], [1], [0], [0], [0, 0, 1, 0], [], []>} : vector<8x8xf32>, vector<8x8xf32>, vector<8x8xf32> -> vector<8x8xf32>
    %c0_51 = arith.constant 0 : index
    %c1_52 = arith.constant 1 : index
    %c0_53 = arith.constant 0 : index
    %c0_54 = arith.constant 0 : index
    %94 = vector.load %arg11[%c0_51, %c1_52, %c0_53, %c0_54] : memref<4x2x8x8xf32, #tpu.memory_space<vmem>>, vector<1x1x8x8xf32>
    %95 = vector.shape_cast %94 : vector<1x1x8x8xf32> to vector<8x8xf32>
    %96 = vector.shape_cast %93 : vector<8x8xf32> to vector<1x1x8x8xf32>
    tpu.vector_store %arg11[%c0_51, %c1_52, %c0_53, %c0_54], %96 {strides = array<i32>} : memref<4x2x8x8xf32, #tpu.memory_space<vmem>>, vector<1x1x8x8xf32>,
    %cst_55 = arith.constant dense<0xFF800000> : vector<8xf32>
    %97 = vector.multi_reduction <maximumf>, %93, %cst_55 [1] : vector<8x8xf32> to vector<8xf32>
    %98 = vector.shape_cast %97 : vector<8xf32> to vector<8x1xf32>
    %99 = vector.broadcast %98 : vector<8x1xf32> to vector<8x8xf32>
    %100 = arith.subf %93, %99 : vector<8x8xf32>
    %101 = math.exp %100 : vector<8x8xf32>
    %cst_56 = arith.constant dense<0.000000e+00> : vector<8xf32>
    %102 = vector.multi_reduction <add>, %101, %cst_56 [1] : vector<8x8xf32> to vector<8xf32>
    %103 = vector.shape_cast %102 : vector<8xf32> to vector<8x1xf32>
    %104 = vector.broadcast %103 : vector<8x1xf32> to vector<8x8xf32>
    %105 = arith.divf %101, %104 : vector<8x8xf32>
    %cst_57 = arith.constant dense<0.000000e+00> : vector<8x8xf32>
    %106 = tpu.matmul %105, %92, %cst_57 {dimension_numbers = #tpu.dot_dimension_numbers<[1], [0], [0], [1], [0, 0, 1, 1], [], []>} : vector<8x8xf32>, vector<8x8xf32>, vector<8x8xf32> -> vector<8x8xf32>
    %c8_58 = arith.constant 8 : index
    %c0_59 = arith.constant 0 : index
    %107 = vector.load %arg12[%c8_58, %c0_59] : memref<16x32xf32, #tpu.memory_space<vmem>>, vector<8x8xf32>
    tpu.vector_store %arg12[%c8_58, %c0_59], %106 {strides = array<i32>} : memref<16x32xf32, #tpu.memory_space<vmem>>, vector<8x8xf32>,
    %108 = vector.extract_strided_slice %7 {offsets = [8, 8], sizes = [8, 8], strides = [1, 1]} : vector<16x32xf32> to vector<8x8xf32>
    %109 = vector.extract_strided_slice %12 {offsets = [8, 8], sizes = [8, 8], strides = [1, 1]} : vector<16x32xf32> to vector<8x8xf32>
    %110 = vector.extract_strided_slice %17 {offsets = [8, 8], sizes = [8, 8], strides = [1, 1]} : vector<16x32xf32> to vector<8x8xf32>
    %cst_60 = arith.constant dense<0.000000e+00> : vector<8x8xf32>
    %111 = tpu.matmul %108, %109, %cst_60 {dimension_numbers = #tpu.dot_dimension_numbers<[1], [1], [0], [0], [0, 0, 1, 0], [], []>} : vector<8x8xf32>, vector<8x8xf32>, vector<8x8xf32> -> vector<8x8xf32>
    %c1_61 = arith.constant 1 : index
    %c1_62 = arith.constant 1 : index
    %c0_63 = arith.constant 0 : index
    %c0_64 = arith.constant 0 : index
    %112 = vector.load %arg11[%c1_61, %c1_62, %c0_63, %c0_64] : memref<4x2x8x8xf32, #tpu.memory_space<vmem>>, vector<1x1x8x8xf32>
    %113 = vector.shape_cast %112 : vector<1x1x8x8xf32> to vector<8x8xf32>
    %114 = vector.shape_cast %111 : vector<8x8xf32> to vector<1x1x8x8xf32>
    tpu.vector_store %arg11[%c1_61, %c1_62, %c0_63, %c0_64], %114 {strides = array<i32>} : memref<4x2x8x8xf32, #tpu.memory_space<vmem>>, vector<1x1x8x8xf32>,
    %cst_65 = arith.constant dense<0xFF800000> : vector<8xf32>
    %115 = vector.multi_reduction <maximumf>, %111, %cst_65 [1] : vector<8x8xf32> to vector<8xf32>
    %116 = vector.shape_cast %115 : vector<8xf32> to vector<8x1xf32>
    %117 = vector.broadcast %116 : vector<8x1xf32> to vector<8x8xf32>
    %118 = arith.subf %111, %117 : vector<8x8xf32>
    %119 = math.exp %118 : vector<8x8xf32>
    %cst_66 = arith.constant dense<0.000000e+00> : vector<8xf32>
    %120 = vector.multi_reduction <add>, %119, %cst_66 [1] : vector<8x8xf32> to vector<8xf32>
    %121 = vector.shape_cast %120 : vector<8xf32> to vector<8x1xf32>
    %122 = vector.broadcast %121 : vector<8x1xf32> to vector<8x8xf32>
    %123 = arith.divf %119, %122 : vector<8x8xf32>
    %cst_67 = arith.constant dense<0.000000e+00> : vector<8x8xf32>
    %124 = tpu.matmul %123, %110, %cst_67 {dimension_numbers = #tpu.dot_dimension_numbers<[1], [0], [0], [1], [0, 0, 1, 1], [], []>} : vector<8x8xf32>, vector<8x8xf32>, vector<8x8xf32> -> vector<8x8xf32>
    %c8_68 = arith.constant 8 : index
    %c8_69 = arith.constant 8 : index
    %125 = vector.load %arg12[%c8_68, %c8_69] : memref<16x32xf32, #tpu.memory_space<vmem>>, vector<8x8xf32>
    tpu.vector_store %arg12[%c8_68, %c8_69], %124 {strides = array<i32>} : memref<16x32xf32, #tpu.memory_space<vmem>>, vector<8x8xf32>,
    %126 = vector.extract_strided_slice %7 {offsets = [8, 16], sizes = [8, 8], strides = [1, 1]} : vector<16x32xf32> to vector<8x8xf32>
    %127 = vector.extract_strided_slice %12 {offsets = [8, 16], sizes = [8, 8], strides = [1, 1]} : vector<16x32xf32> to vector<8x8xf32>
    %128 = vector.extract_strided_slice %17 {offsets = [8, 16], sizes = [8, 8], strides = [1, 1]} : vector<16x32xf32> to vector<8x8xf32>
    %cst_70 = arith.constant dense<0.000000e+00> : vector<8x8xf32>
    %129 = tpu.matmul %126, %127, %cst_70 {dimension_numbers = #tpu.dot_dimension_numbers<[1], [1], [0], [0], [0, 0, 1, 0], [], []>} : vector<8x8xf32>, vector<8x8xf32>, vector<8x8xf32> -> vector<8x8xf32>
    %c2_71 = arith.constant 2 : index
    %c1_72 = arith.constant 1 : index
    %c0_73 = arith.constant 0 : index
    %c0_74 = arith.constant 0 : index
    %130 = vector.load %arg11[%c2_71, %c1_72, %c0_73, %c0_74] : memref<4x2x8x8xf32, #tpu.memory_space<vmem>>, vector<1x1x8x8xf32>
    %131 = vector.shape_cast %130 : vector<1x1x8x8xf32> to vector<8x8xf32>
    %132 = vector.shape_cast %129 : vector<8x8xf32> to vector<1x1x8x8xf32>
    tpu.vector_store %arg11[%c2_71, %c1_72, %c0_73, %c0_74], %132 {strides = array<i32>} : memref<4x2x8x8xf32, #tpu.memory_space<vmem>>, vector<1x1x8x8xf32>,
    %cst_75 = arith.constant dense<0xFF800000> : vector<8xf32>
    %133 = vector.multi_reduction <maximumf>, %129, %cst_75 [1] : vector<8x8xf32> to vector<8xf32>
    %134 = vector.shape_cast %133 : vector<8xf32> to vector<8x1xf32>
    %135 = vector.broadcast %134 : vector<8x1xf32> to vector<8x8xf32>
    %136 = arith.subf %129, %135 : vector<8x8xf32>
    %137 = math.exp %136 : vector<8x8xf32>
    %cst_76 = arith.constant dense<0.000000e+00> : vector<8xf32>
    %138 = vector.multi_reduction <add>, %137, %cst_76 [1] : vector<8x8xf32> to vector<8xf32>
    %139 = vector.shape_cast %138 : vector<8xf32> to vector<8x1xf32>
    %140 = vector.broadcast %139 : vector<8x1xf32> to vector<8x8xf32>
    %141 = arith.divf %137, %140 : vector<8x8xf32>
    %cst_77 = arith.constant dense<0.000000e+00> : vector<8x8xf32>
    %142 = tpu.matmul %141, %128, %cst_77 {dimension_numbers = #tpu.dot_dimension_numbers<[1], [0], [0], [1], [0, 0, 1, 1], [], []>} : vector<8x8xf32>, vector<8x8xf32>, vector<8x8xf32> -> vector<8x8xf32>
    %c8_78 = arith.constant 8 : index
    %c16_79 = arith.constant 16 : index
    %143 = vector.load %arg12[%c8_78, %c16_79] : memref<16x32xf32, #tpu.memory_space<vmem>>, vector<8x8xf32>
    tpu.vector_store %arg12[%c8_78, %c16_79], %142 {strides = array<i32>} : memref<16x32xf32, #tpu.memory_space<vmem>>, vector<8x8xf32>,
    %144 = vector.extract_strided_slice %7 {offsets = [8, 24], sizes = [8, 8], strides = [1, 1]} : vector<16x32xf32> to vector<8x8xf32>
    %145 = vector.extract_strided_slice %12 {offsets = [8, 24], sizes = [8, 8], strides = [1, 1]} : vector<16x32xf32> to vector<8x8xf32>
    %146 = vector.extract_strided_slice %17 {offsets = [8, 24], sizes = [8, 8], strides = [1, 1]} : vector<16x32xf32> to vector<8x8xf32>
    %cst_80 = arith.constant dense<0.000000e+00> : vector<8x8xf32>
    %147 = tpu.matmul %144, %145, %cst_80 {dimension_numbers = #tpu.dot_dimension_numbers<[1], [1], [0], [0], [0, 0, 1, 0], [], []>} : vector<8x8xf32>, vector<8x8xf32>, vector<8x8xf32> -> vector<8x8xf32>
    %c3_81 = arith.constant 3 : index
    %c1_82 = arith.constant 1 : index
    %c0_83 = arith.constant 0 : index
    %c0_84 = arith.constant 0 : index
    %148 = vector.load %arg11[%c3_81, %c1_82, %c0_83, %c0_84] : memref<4x2x8x8xf32, #tpu.memory_space<vmem>>, vector<1x1x8x8xf32>
    %149 = vector.shape_cast %148 : vector<1x1x8x8xf32> to vector<8x8xf32>
    %150 = vector.shape_cast %147 : vector<8x8xf32> to vector<1x1x8x8xf32>
    tpu.vector_store %arg11[%c3_81, %c1_82, %c0_83, %c0_84], %150 {strides = array<i32>} : memref<4x2x8x8xf32, #tpu.memory_space<vmem>>, vector<1x1x8x8xf32>,
    %cst_85 = arith.constant dense<0xFF800000> : vector<8xf32>
    %151 = vector.multi_reduction <maximumf>, %147, %cst_85 [1] : vector<8x8xf32> to vector<8xf32>
    %152 = vector.shape_cast %151 : vector<8xf32> to vector<8x1xf32>
    %153 = vector.broadcast %152 : vector<8x1xf32> to vector<8x8xf32>
    %154 = arith.subf %147, %153 : vector<8x8xf32>
    %155 = math.exp %154 : vector<8x8xf32>
    %cst_86 = arith.constant dense<0.000000e+00> : vector<8xf32>
    %156 = vector.multi_reduction <add>, %155, %cst_86 [1] : vector<8x8xf32> to vector<8xf32>
    %157 = vector.shape_cast %156 : vector<8xf32> to vector<8x1xf32>
    %158 = vector.broadcast %157 : vector<8x1xf32> to vector<8x8xf32>
    %159 = arith.divf %155, %158 : vector<8x8xf32>
    %cst_87 = arith.constant dense<0.000000e+00> : vector<8x8xf32>
    %160 = tpu.matmul %159, %146, %cst_87 {dimension_numbers = #tpu.dot_dimension_numbers<[1], [0], [0], [1], [0, 0, 1, 1], [], []>} : vector<8x8xf32>, vector<8x8xf32>, vector<8x8xf32> -> vector<8x8xf32>
    %c8_88 = arith.constant 8 : index
    %c24_89 = arith.constant 24 : index
    %161 = vector.load %arg12[%c8_88, %c24_89] : memref<16x32xf32, #tpu.memory_space<vmem>>, vector<8x8xf32>
    tpu.vector_store %arg12[%c8_88, %c24_89], %160 {strides = array<i32>} : memref<16x32xf32, #tpu.memory_space<vmem>>, vector<8x8xf32>,
    %c0_90 = arith.constant 0 : index
    %c0_91 = arith.constant 0 : index
    %162 = vector.load %arg12[%c0_90, %c0_91] : memref<16x32xf32, #tpu.memory_space<vmem>>, vector<16x32xf32>
    %c0_92 = arith.constant 0 : index
    %c0_93 = arith.constant 0 : index
    %163 = vector.load %arg8[%c0_92, %c0_93] : memref<32x32xf32, #tpu.memory_space<vmem>>, vector<32x32xf32>
    %cst_94 = arith.constant dense<0.000000e+00> : vector<16x32xf32>
    %164 = tpu.matmul %162, %163, %cst_94 {dimension_numbers = #tpu.dot_dimension_numbers<[1], [0], [0], [1], [0, 0, 1, 1], [], []>} : vector<16x32xf32>, vector<32x32xf32>, vector<16x32xf32> -> vector<16x32xf32>
    %c0_95 = arith.constant 0 : index
    %c0_96 = arith.constant 0 : index
    %165 = vector.load %arg9[%c0_95, %c0_96] : memref<1x32xf32, #tpu.memory_space<vmem>>, vector<1x32xf32>
    %166 = vector.broadcast %165 : vector<1x32xf32> to vector<16x32xf32>
    %167 = arith.addf %164, %166 : vector<16x32xf32>
    %c0_97 = arith.constant 0 : index
    %c0_98 = arith.constant 0 : index
    %168 = vector.load %arg10[%c0_97, %c0_98] : memref<16x32xf32, #tpu.memory_space<vmem>>, vector<16x32xf32>
    tpu.vector_store %arg10[%c0_97, %c0_98], %167 {strides = array<i32>} : memref<16x32xf32, #tpu.memory_space<vmem>>, vector<16x32xf32>,
    return
  }
  func.func @transform_0(%arg0: i32) -> (i32, i32) {
    %c0_i32 = arith.constant 0 : i32
    %c0_i32_0 = arith.constant 0 : i32
    return %arg0, %c0_i32 : i32, i32
  }
  func.func @transform_1(%arg0: i32) -> (i32, i32) {
    %c0_i32 = arith.constant 0 : i32
    %c0_i32_0 = arith.constant 0 : i32
    %c0_i32_1 = arith.constant 0 : i32
    return %c0_i32, %c0_i32_0 : i32, i32
  }
  func.func @transform_2(%arg0: i32) -> (i32, i32) {
    %c0_i32 = arith.constant 0 : i32
    %c0_i32_0 = arith.constant 0 : i32
    %c0_i32_1 = arith.constant 0 : i32
    return %c0_i32, %c0_i32_0 : i32, i32
  }
  func.func @transform_3(%arg0: i32) -> (i32, i32) {
    %c0_i32 = arith.constant 0 : i32
    %c0_i32_0 = arith.constant 0 : i32
    %c0_i32_1 = arith.constant 0 : i32
    return %c0_i32, %c0_i32_0 : i32, i32
  }
  func.func @transform_4(%arg0: i32) -> (i32, i32) {
    %c0_i32 = arith.constant 0 : i32
    %c0_i32_0 = arith.constant 0 : i32
    %c0_i32_1 = arith.constant 0 : i32
    return %c0_i32, %c0_i32_0 : i32, i32
  }
  func.func @transform_5(%arg0: i32) -> (i32, i32) {
    %c0_i32 = arith.constant 0 : i32
    %c0_i32_0 = arith.constant 0 : i32
    %c0_i32_1 = arith.constant 0 : i32
    return %c0_i32, %c0_i32_0 : i32, i32
  }
  func.func @transform_6(%arg0: i32) -> (i32, i32) {
    %c0_i32 = arith.constant 0 : i32
    %c0_i32_0 = arith.constant 0 : i32
    %c0_i32_1 = arith.constant 0 : i32
    return %c0_i32, %c0_i32_0 : i32, i32
  }
  func.func @transform_7(%arg0: i32) -> (i32, i32) {
    %c0_i32 = arith.constant 0 : i32
    %c0_i32_0 = arith.constant 0 : i32
    %c0_i32_1 = arith.constant 0 : i32
    return %c0_i32, %c0_i32_0 : i32, i32
  }
  func.func @transform_8(%arg0: i32) -> (i32, i32) {
    %c0_i32 = arith.constant 0 : i32
    %c0_i32_0 = arith.constant 0 : i32
    %c0_i32_1 = arith.constant 0 : i32
    return %c0_i32, %c0_i32_0 : i32, i32
  }
  func.func @transform_9(%arg0: i32) -> (i32, i32) {
    %c0_i32 = arith.constant 0 : i32
    %c0_i32_0 = arith.constant 0 : i32
    return %arg0, %c0_i32 : i32, i32
  }
  func.func @transform_10(%arg0: i32) -> (i32, i32, i32, i32) {
    %c0_i32 = arith.constant 0 : i32
    %c0_i32_0 = arith.constant 0 : i32
    %c0_i32_1 = arith.constant 0 : i32
    %c0_i32_2 = arith.constant 0 : i32
    return %c0_i32, %arg0, %c0_i32_0, %c0_i32_1 : i32, i32, i32, i32
  }
}

</mosaic_0001>

<llo_original>
// kernel: tpu_custom_call.1
$region0: #{tpu_custom_call.1}
  #allocation0 [shape = 'u32[]', space=smem, size = 0x4, offset = 0x4, fixed_abs, tag = 'smem constant byte address 0x4 - core index']
  #allocation1 [shape = 'u32[144,128]{1,0:T(1,128)}', space=vmem, size = 0x12000, scoped, tag = 'internal scratch']
  #allocation2 [shape = 'f32[16,32]{1,0:T(8,128)}', space=vmem, size = 0x2000, scoped, tag = 'scratch operand']
  %s0 = inlined_call_operand.hbm [shape: f32[16,32], index: 0, kind: input, shape index: {}]
  %s1 = inlined_call_operand.hbm [shape: f32[32,32], index: 1, kind: input, shape index: {}]
  %s2 = inlined_call_operand.vmem [shape: f32[1,32], index: 2, kind: input, shape index: {}]
  %s3 = inlined_call_operand.hbm [shape: f32[32,32], index: 3, kind: input, shape index: {}]
  %s4 = inlined_call_operand.vmem [shape: f32[1,32], index: 4, kind: input, shape index: {}]
  %s5 = inlined_call_operand.hbm [shape: f32[32,32], index: 5, kind: input, shape index: {}]
  %s6 = inlined_call_operand.vmem [shape: f32[1,32], index: 6, kind: input, shape index: {}]
  %s7 = inlined_call_operand.hbm [shape: f32[32,32], index: 7, kind: input, shape index: {}]
  %s8 = inlined_call_operand.vmem [shape: f32[1,32], index: 8, kind: input, shape index: {}]
  %s9 = inlined_call_operand.hbm [shape: f32[16,32], index: 9, kind: output, shape index: {0}]
  %s10 = inlined_call_operand.hbm [shape: f32[4,2,8,8], index: 10, kind: output, shape index: {1}]
  %11 = xla_tuple %s9, %s10
  %s12 = sld [smem:[#allocation0]]
  $region74: #{tpu_custom_call.1} parent=0
    _
  %s14 = ssub.s32 1, %s12
  %s15 = scalar_select 0, %s14, %s12
  $region1: #{tpu_custom_call.1} parent=0
    #allocation3 [shape = 'u8[8192]{0}', space=vmem, size = 0x2000, scoped, tag = 'input window, operand 0, single buffered']
    #allocation4 [shape = 's32[1]{0}', space=sflag, size = 0x4, scoped, tag = 'scoped memory for tpu_custom_call.1']
    #allocation5 [shape = 's32[1]{0}', space=sflag, size = 0x4, scoped, tag = 'scoped memory for tpu_custom_call.1']
    #allocation6 [shape = 'u8[16384]{0}', space=vmem, size = 0x4000, scoped, tag = 'input window, operand 1, single buffered']
    #allocation7 [shape = 's32[1]{0}', space=sflag, size = 0x4, scoped, tag = 'scoped memory for tpu_custom_call.1']
    #allocation8 [shape = 'u8[16384]{0}', space=vmem, size = 0x4000, scoped, tag = 'input window, operand 3, single buffered']
    #allocation9 [shape = 'u8[16384]{0}', space=vmem, size = 0x4000, scoped, tag = 'input window, operand 5, single buffered']
    #allocation10 [shape = 's32[1]{0}', space=sflag, size = 0x4, scoped, tag = 'scoped memory for tpu_custom_call.1']
    #allocation11 [shape = 'u8[16384]{0}', space=vmem, size = 0x4000, scoped, tag = 'input window, operand 7, single buffered']
    #allocation12 [shape = 'u8[8192]{0}', space=vmem, size = 0x2000, scoped, tag = 'output window, operand 0, single buffered']
    #allocation13 [shape = 'u8[32768]{0}', space=vmem, size = 0x8000, scoped, tag = 'output window, operand 1, single buffered']
    #allocation14 [shape = 's32[1]{0}', space=sflag, size = 0x4, scoped, tag = 'scoped memory for tpu_custom_call.1']
    %16 = vsyncpa [#allocation4], 0
    %17 = vsyncpa [#allocation7], 0
    %18 = vsyncpa [#allocation10], 0
    %19 = vsyncpa [#allocation5], 0
    %20 = vsyncpa [#allocation14], 0
    // Predicated region
    $region2: #{tpu_custom_call.1} parent=1 // pred_check
      _
    $region3: #{tpu_custom_call.1} parent=1 // pred_check_branch
      %22 = sbr.rel (0) target = $region5
    $region4: #{tpu_custom_call.1} parent=1 // pred_region
      %s24 = ssub.s32 256, 256
      %25 = vsyncadd [#allocation4], %s24
      %s26 = sshll.u32 [#allocation3], 4
      %s27 = int_to_ptr.vmem [resolvable:$true] %s26
      %32 = dma.hbm_to_vmem [thread:$0]  %s0, 256, %s27, [#allocation4], 128, 128, 8
    $region5: #{tpu_custom_call.1} parent=1 // pred_fallthru
      _
    // Predicated region
    $region6: #{tpu_custom_call.1} parent=1 // pred_check
      _
    $region7: #{tpu_custom_call.1} parent=1 // pred_check_branch
      %34 = sbr.rel (0) target = $region9
    $region8: #{tpu_custom_call.1} parent=1 // pred_region
      %s36 = ssub.s32 512, 512
      %37 = vsyncadd [#allocation7], %s36
      %s38 = sshll.u32 [#allocation6], 4
      %s39 = int_to_ptr.vmem [resolvable:$true] %s38
      %44 = dma.hbm_to_vmem [thread:$0]  %s1, 512, %s39, [#allocation7], 128, 128, 8
    $region9: #{tpu_custom_call.1} parent=1 // pred_fallthru
      _
    // Predicated region
    $region10: #{tpu_custom_call.1} parent=1 // pred_check
      _
    $region11: #{tpu_custom_call.1} parent=1 // pred_check_branch
      %46 = sbr.rel (0) target = $region13
    $region12: #{tpu_custom_call.1} parent=1 // pred_region
      _
    $region13: #{tpu_custom_call.1} parent=1 // pred_fallthru
      _
    // Predicated region
    $region14: #{tpu_custom_call.1} parent=1 // pred_check
      _
    $region15: #{tpu_custom_call.1} parent=1 // pred_check_branch
      %48 = sbr.rel (0) target = $region17
    $region16: #{tpu_custom_call.1} parent=1 // pred_region
      %s50 = ssub.s32 512, 512
      %51 = vsyncadd [#allocation7], %s50
      %s52 = sshll.u32 [#allocation8], 4
      %s53 = int_to_ptr.vmem [resolvable:$true] %s52
      %58 = dma.hbm_to_vmem [thread:$0]  %s3, 512, %s53, [#allocation7], 128, 128, 8
    $region17: #{tpu_custom_call.1} parent=1 // pred_fallthru
      _
    // Predicated region
    $region18: #{tpu_custom_call.1} parent=1 // pred_check
      _
    $region19: #{tpu_custom_call.1} parent=1 // pred_check_branch
      %60 = sbr.rel (0) target = $region21
    $region20: #{tpu_custom_call.1} parent=1 // pred_region
      _
    $region21: #{tpu_custom_call.1} parent=1 // pred_fallthru
      _
    // Predicated region
    $region22: #{tpu_custom_call.1} parent=1 // pred_check
      _
    $region23: #{tpu_custom_call.1} parent=1 // pred_check_branch
      %62 = sbr.rel (0) target = $region25
    $region24: #{tpu_custom_call.1} parent=1 // pred_region
      %s64 = ssub.s32 512, 512
      %65 = vsyncadd [#allocation10], %s64
      %s66 = sshll.u32 [#allocation9], 4
      %s67 = int_to_ptr.vmem [resolvable:$true] %s66
      %72 = dma.hbm_to_vmem [thread:$0]  %s5, 512, %s67, [#allocation10], 128, 128, 8
    $region25: #{tpu_custom_call.1} parent=1 // pred_fallthru
      _
    // Predicated region
    $region26: #{tpu_custom_call.1} parent=1 // pred_check
      _
    $region27: #{tpu_custom_call.1} parent=1 // pred_check_branch
      %74 = sbr.rel (0) target = $region29
    $region28: #{tpu_custom_call.1} parent=1 // pred_region
      _
    $region29: #{tpu_custom_call.1} parent=1 // pred_fallthru
      _
    // Predicated region
    $region30: #{tpu_custom_call.1} parent=1 // pred_check
      _
    $region31: #{tpu_custom_call.1} parent=1 // pred_check_branch
      %76 = sbr.rel (0) target = $region33
    $region32: #{tpu_custom_call.1} parent=1 // pred_region
      %s78 = ssub.s32 512, 512
      %79 = vsyncadd [#allocation10], %s78
      %s80 = sshll.u32 [#allocation11], 4
      %s81 = int_to_ptr.vmem [resolvable:$true] %s80
      %86 = dma.hbm_to_vmem [thread:$0]  %s7, 512, %s81, [#allocation10], 128, 128, 8
    $region33: #{tpu_custom_call.1} parent=1 // pred_fallthru
      _
    // Predicated region
    $region34: #{tpu_custom_call.1} parent=1 // pred_check
      _
    $region35: #{tpu_custom_call.1} parent=1 // pred_check_branch
      %88 = sbr.rel (0) target = $region37
    $region36: #{tpu_custom_call.1} parent=1 // pred_region
      _
    $region37: #{tpu_custom_call.1} parent=1 // pred_fallthru
      _
    // Predicated region
    $region38: #{tpu_custom_call.1} parent=1 // pred_check
      _
    $region39: #{tpu_custom_call.1} parent=1 // pred_check_branch
      %90 = sbr.rel (0) target = $region41
    $region40: #{tpu_custom_call.1} parent=1 // pred_region
      %91 = dma.done [#allocation4], 256
    $region41: #{tpu_custom_call.1} parent=1 // pred_fallthru
      _
    // Predicated region
    $region42: #{tpu_custom_call.1} parent=1 // pred_check
      _
    $region43: #{tpu_custom_call.1} parent=1 // pred_check_branch
      %93 = sbr.rel (0) target = $region45
    $region44: #{tpu_custom_call.1} parent=1 // pred_region
      %94 = dma.done [#allocation7], 512
    $region45: #{tpu_custom_call.1} parent=1 // pred_fallthru
      _
    // Predicated region
    $region46: #{tpu_custom_call.1} parent=1 // pred_check
      _
    $region47: #{tpu_custom_call.1} parent=1 // pred_check_branch
      %96 = sbr.rel (0) target = $region49
    $region48: #{tpu_custom_call.1} parent=1 // pred_region
      %97 = dma.done [#allocation7], 512
    $region49: #{tpu_custom_call.1} parent=1 // pred_fallthru
      _
    // Predicated region
    $region50: #{tpu_custom_call.1} parent=1 // pred_check
      _
    $region51: #{tpu_custom_call.1} parent=1 // pred_check_branch
      %99 = sbr.rel (0) target = $region53
    $region52: #{tpu_custom_call.1} parent=1 // pred_region
      %100 = dma.done [#allocation10], 512
    $region53: #{tpu_custom_call.1} parent=1 // pred_fallthru
      _
    // Predicated region
    $region54: #{tpu_custom_call.1} parent=1 // pred_check
      _
    $region55: #{tpu_custom_call.1} parent=1 // pred_check_branch
      %102 = sbr.rel (0) target = $region57
    $region56: #{tpu_custom_call.1} parent=1 // pred_region
      %103 = dma.done [#allocation10], 512
    $region57: #{tpu_custom_call.1} parent=1 // pred_fallthru
      _
    %v104 = vld [vmem:[#allocation3] sm:$0xff]
    %v105 = vld [vmem:[#allocation3 + $0x8] sm:$0xff]
    %v106 = vld [vmem:[#allocation6] sm:$0xff]
    %v107 = vld [vmem:[#allocation6 + $0x8] sm:$0xff]
    %v108 = vld [vmem:[#allocation6 + $0x10] sm:$0xff]
    %v109 = vld [vmem:[#allocation6 + $0x18] sm:$0xff]
    %v110 = vld [vmem:[%s2] sm:$0x1]
    %v112 = vlaneseq
    %v113 = vshrl.u32 %v112, 7
    %v114 = vsub.s32 0, %v113
    %v115 = vrot.slane %v110, %v114
    %vm117 = vcmask 261120
    %v119 = vsel %vm117, %v104, 0
    %v122 = vsel %vm117, %v105, 0
    %124 = vmatprep.subr.mxu0 0.0
    %125 = vmatpush1.msra.mxu0 0.0
    %126 = vmatprep.subr.mxu0 0.0
    %127 = vmatpush1.msra.mxu0 0.0
    %128 = vmatprep.subr.mxu0 0.0
    %129 = vmatpush1.msra.mxu0 0.0
    %130 = vmatprep.subr.mxu0 0.0
    %131 = vmatpush1.msra.mxu0 0.0
    %132 = vmatprep.subr.mxu0 0.0
    %133 = vmatpush1.msra.mxu0 0.0
    %134 = vmatprep.subr.mxu0 0.0
    %135 = vmatpush1.msra.mxu0 0.0
    %136 = vmatprep.subr.mxu0 0.0
    %137 = vmatpush1.msra.mxu0 0.0
    %138 = vmatprep.subr.mxu0 0.0
    %139 = vmatpush1.msra.mxu0 0.0
    %140 = vmatprep.subr.mxu0 0.0
    %141 = vmatpush1.msra.mxu0 0.0
    %142 = vmatprep.subr.mxu0 0.0
    %143 = vmatpush1.msra.mxu0 0.0
    %144 = vmatprep.subr.mxu0 0.0
    %145 = vmatpush1.msra.mxu0 0.0
    %146 = vmatprep.subr.mxu0 0.0
    %147 = vmatpush1.msra.mxu0 0.0
    %148 = vmatprep.subr.mxu0 0.0
    %149 = vmatpush1.msra.mxu0 %v109
    %150 = vmatprep.subr.mxu0 0.0
    %151 = vmatpush1.msra.mxu0 %v108
    %152 = vmatprep.subr.mxu0 0.0
    %153 = vmatpush1.msra.mxu0 %v107
    %154 = vmatprep.subr.mxu0 0.0
    %155 = vmatpush1.msra.mxu0 %v106
    %156 = vmatprep.subr.mxu0 0.0
    %157 = vmatpush2.msra.mxu0 0.0
    %158 = vmatprep.subr.mxu0 0.0
    %159 = vmatpush2.msra.mxu0 0.0
    %160 = vmatprep.subr.mxu0 0.0
    %161 = vmatpush2.msra.mxu0 0.0
    %162 = vmatprep.subr.mxu0 0.0
    %163 = vmatpush2.msra.mxu0 0.0
    %164 = vmatprep.subr.mxu0 0.0
    %165 = vmatpush2.msra.mxu0 0.0
    %166 = vmatprep.subr.mxu0 0.0
    %167 = vmatpush2.msra.mxu0 0.0
    %168 = vmatprep.subr.mxu0 0.0
    %169 = vmatpush2.msra.mxu0 0.0
    %170 = vmatprep.subr.mxu0 0.0
    %171 = vmatpush2.msra.mxu0 0.0
    %172 = vmatprep.subr.mxu0 0.0
    %173 = vmatpush2.msra.mxu0 0.0
    %174 = vmatprep.subr.mxu0 0.0
    %175 = vmatpush2.msra.mxu0 0.0
    %176 = vmatprep.subr.mxu0 0.0
    %177 = vmatpush2.msra.mxu0 0.0
    %178 = vmatprep.subr.mxu0 0.0
    %179 = vmatpush2.msra.mxu0 0.0
    %180 = vmatprep.subr.mxu0 0.0
    %181 = vmatpush2.msra.mxu0 0.0
    %182 = vmatprep.subr.mxu0 0.0
    %183 = vmatpush2.msra.mxu0 0.0
    %184 = vmatprep.subr.mxu0 0.0
    %185 = vmatpush2.msra.mxu0 0.0
    %186 = vmatprep.subr.mxu0 0.0
    %187 = vmatpush2.msra.mxu0 0.0
    %188 = vmatprep.mubr.f32.mxu0 0.0
    %189 = vmatmul.mubr.f32.gmra.mxu0 %v119
    %v190 = vpop.f32.mrf.mxu0
    %v191 = vadd.f32 %v115, %v190
    %v192 = vpop.f32.mrf.mxu0
    %193 = vmatprep.mubr.f32.mxu0 0.0
    %194 = vmatmul.mubr.f32.gmra.mxu0 %v122
    %v195 = vpop.f32.mrf.mxu0
    %v196 = vadd.f32 %v115, %v195
    %v197 = vpop.f32.mrf.mxu0
    %198 = vdwg.mxu0
    %v199 = vmul.f32 %v191, 0.35355338
    %v200 = vmul.f32 %v196, 0.35355338
    %v201 = vld [vmem:[#allocation8] sm:$0xff]
    %v202 = vld [vmem:[#allocation8 + $0x8] sm:$0xff]
    %v203 = vld [vmem:[#allocation8 + $0x10] sm:$0xff]
    %v204 = vld [vmem:[#allocation8 + $0x18] sm:$0xff]
    %v205 = vld [vmem:[%s4] sm:$0x1]
    %v207 = vlaneseq
    %v208 = vshrl.u32 %v207, 7
    %v209 = vsub.s32 0, %v208
    %v210 = vrot.slane %v205, %v209
    %212 = vmatprep.subr.mxu0 0.0
    %213 = vmatpush1.msra.mxu0 0.0
    %214 = vmatprep.subr.mxu0 0.0
    %215 = vmatpush1.msra.mxu0 0.0
    %216 = vmatprep.subr.mxu0 0.0
    %217 = vmatpush1.msra.mxu0 0.0
    %218 = vmatprep.subr.mxu0 0.0
    %219 = vmatpush1.msra.mxu0 0.0
    %220 = vmatprep.subr.mxu0 0.0
    %221 = vmatpush1.msra.mxu0 0.0
    %222 = vmatprep.subr.mxu0 0.0
    %223 = vmatpush1.msra.mxu0 0.0
    %224 = vmatprep.subr.mxu0 0.0
    %225 = vmatpush1.msra.mxu0 0.0
    %226 = vmatprep.subr.mxu0 0.0
    %227 = vmatpush1.msra.mxu0 0.0
    %228 = vmatprep.subr.mxu0 0.0
    %229 = vmatpush1.msra.mxu0 0.0
    %230 = vmatprep.subr.mxu0 0.0
    %231 = vmatpush1.msra.mxu0 0.0
    %232 = vmatprep.subr.mxu0 0.0
    %233 = vmatpush1.msra.mxu0 0.0
    %234 = vmatprep.subr.mxu0 0.0
    %235 = vmatpush1.msra.mxu0 0.0
    %236 = vmatprep.subr.mxu0 0.0
    %237 = vmatpush1.msra.mxu0 %v204
    %238 = vmatprep.subr.mxu0 0.0
    %239 = vmatpush1.msra.mxu0 %v203
    %240 = vmatprep.subr.mxu0 0.0
    %241 = vmatpush1.msra.mxu0 %v202
    %242 = vmatprep.subr.mxu0 0.0
    %243 = vmatpush1.msra.mxu0 %v201
    %244 = vmatprep.subr.mxu0 0.0
    %245 = vmatpush2.msra.mxu0 0.0
    %246 = vmatprep.subr.mxu0 0.0
    %247 = vmatpush2.msra.mxu0 0.0
    %248 = vmatprep.subr.mxu0 0.0
    %249 = vmatpush2.msra.mxu0 0.0
    %250 = vmatprep.subr.mxu0 0.0
    %251 = vmatpush2.msra.mxu0 0.0
    %252 = vmatprep.subr.mxu0 0.0
    %253 = vmatpush2.msra.mxu0 0.0
    %254 = vmatprep.subr.mxu0 0.0
    %255 = vmatpush2.msra.mxu0 0.0
    %256 = vmatprep.subr.mxu0 0.0
    %257 = vmatpush2.msra.mxu0 0.0
    %258 = vmatprep.subr.mxu0 0.0
    %259 = vmatpush2.msra.mxu0 0.0
    %260 = vmatprep.subr.mxu0 0.0
    %261 = vmatpush2.msra.mxu0 0.0
    %262 = vmatprep.subr.mxu0 0.0
    %263 = vmatpush2.msra.mxu0 0.0
    %264 = vmatprep.subr.mxu0 0.0
    %265 = vmatpush2.msra.mxu0 0.0
    %266 = vmatprep.subr.mxu0 0.0
    %267 = vmatpush2.msra.mxu0 0.0
    %268 = vmatprep.subr.mxu0 0.0
    %269 = vmatpush2.msra.mxu0 0.0
    %270 = vmatprep.subr.mxu0 0.0
    %271 = vmatpush2.msra.mxu0 0.0
    %272 = vmatprep.subr.mxu0 0.0
    %273 = vmatpush2.msra.mxu0 0.0
    %274 = vmatprep.subr.mxu0 0.0
    %275 = vmatpush2.msra.mxu0 0.0
    %276 = vmatprep.mubr.f32.mxu0 0.0
    %277 = vmatmul.mubr.f32.gmra.mxu0 %v119
    %v278 = vpop.f32.mrf.mxu0
    %v279 = vadd.f32 %v210, %v278
    %v280 = vpop.f32.mrf.mxu0
    %281 = vmatprep.mubr.f32.mxu0 0.0
    %282 = vmatmul.mubr.f32.gmra.mxu0 %v122
    %v283 = vpop.f32.mrf.mxu0
    %v284 = vadd.f32 %v210, %v283
    %v285 = vpop.f32.mrf.mxu0
    %286 = vdwg.mxu0
    %v287 = vld [vmem:[#allocation9] sm:$0xff]
    %v288 = vld [vmem:[#allocation9 + $0x8] sm:$0xff]
    %v289 = vld [vmem:[#allocation9 + $0x10] sm:$0xff]
    %v290 = vld [vmem:[#allocation9 + $0x18] sm:$0xff]
    %v291 = vld [vmem:[%s6] sm:$0x1]
    %v293 = vlaneseq
    %v294 = vshrl.u32 %v293, 7
    %v295 = vsub.s32 0, %v294
    %v296 = vrot.slane %v291, %v295
    %298 = vmatprep.subr.mxu0 0.0
    %299 = vmatpush1.msra.mxu0 0.0
    %300 = vmatprep.subr.mxu0 0.0
    %301 = vmatpush1.msra.mxu0 0.0
    %302 = vmatprep.subr.mxu0 0.0
    %303 = vmatpush1.msra.mxu0 0.0
    %304 = vmatprep.subr.mxu0 0.0
    %305 = vmatpush1.msra.mxu0 0.0
    %306 = vmatprep.subr.mxu0 0.0
    %307 = vmatpush1.msra.mxu0 0.0
    %308 = vmatprep.subr.mxu0 0.0
    %309 = vmatpush1.msra.mxu0 0.0
    %310 = vmatprep.subr.mxu0 0.0
    %311 = vmatpush1.msra.mxu0 0.0
    %312 = vmatprep.subr.mxu0 0.0
    %313 = vmatpush1.msra.mxu0 0.0
    %314 = vmatprep.subr.mxu0 0.0
    %315 = vmatpush1.msra.mxu0 0.0
    %316 = vmatprep.subr.mxu0 0.0
    %317 = vmatpush1.msra.mxu0 0.0
    %318 = vmatprep.subr.mxu0 0.0
    %319 = vmatpush1.msra.mxu0 0.0
    %320 = vmatprep.subr.mxu0 0.0
    %321 = vmatpush1.msra.mxu0 0.0
    %322 = vmatprep.subr.mxu0 0.0
    %323 = vmatpush1.msra.mxu0 %v290
    %324 = vmatprep.subr.mxu0 0.0
    %325 = vmatpush1.msra.mxu0 %v289
    %326 = vmatprep.subr.mxu0 0.0
    %327 = vmatpush1.msra.mxu0 %v288
    %328 = vmatprep.subr.mxu0 0.0
    %329 = vmatpush1.msra.mxu0 %v287
    %330 = vmatprep.subr.mxu0 0.0
    %331 = vmatpush2.msra.mxu0 0.0
    %332 = vmatprep.subr.mxu0 0.0
    %333 = vmatpush2.msra.mxu0 0.0
    %334 = vmatprep.subr.mxu0 0.0
    %335 = vmatpush2.msra.mxu0 0.0
    %336 = vmatprep.subr.mxu0 0.0
    %337 = vmatpush2.msra.mxu0 0.0
    %338 = vmatprep.subr.mxu0 0.0
    %339 = vmatpush2.msra.mxu0 0.0
    %340 = vmatprep.subr.mxu0 0.0
    %341 = vmatpush2.msra.mxu0 0.0
    %342 = vmatprep.subr.mxu0 0.0
    %343 = vmatpush2.msra.mxu0 0.0
    %344 = vmatprep.subr.mxu0 0.0
    %345 = vmatpush2.msra.mxu0 0.0
    %346 = vmatprep.subr.mxu0 0.0
    %347 = vmatpush2.msra.mxu0 0.0
    %348 = vmatprep.subr.mxu0 0.0
    %349 = vmatpush2.msra.mxu0 0.0
    %350 = vmatprep.subr.mxu0 0.0
    %351 = vmatpush2.msra.mxu0 0.0
    %352 = vmatprep.subr.mxu0 0.0
    %353 = vmatpush2.msra.mxu0 0.0
    %354 = vmatprep.subr.mxu0 0.0
    %355 = vmatpush2.msra.mxu0 0.0
    %356 = vmatprep.subr.mxu0 0.0
    %357 = vmatpush2.msra.mxu0 0.0
    %358 = vmatprep.subr.mxu0 0.0
    %359 = vmatpush2.msra.mxu0 0.0
    %360 = vmatprep.subr.mxu0 0.0
    %361 = vmatpush2.msra.mxu0 0.0
    %362 = vmatprep.mubr.f32.mxu0 0.0
    %363 = vmatmul.mubr.f32.gmra.mxu0 %v119
    %v364 = vpop.f32.mrf.mxu0
    %v365 = vadd.f32 %v296, %v364
    %v366 = vpop.f32.mrf.mxu0
    %367 = vmatprep.mubr.f32.mxu0 0.0
    %368 = vmatmul.mubr.f32.gmra.mxu0 %v122
    %v369 = vpop.f32.mrf.mxu0
    %v370 = vadd.f32 %v296, %v369
    %v371 = vpop.f32.mrf.mxu0
    %372 = vdwg.mxu0
    %vm373 = vcmask 64512
    %v375 = vsel %vm373, %v199, 0
    %v378 = vsel %vm373, %v279, 0
    %380 = vmatprep.subr.mxu0 0.0
    %381 = vmatpush1.xpose.msra.mxu0 0.0
    %382 = vmatprep.subr.mxu0 0.0
    %383 = vmatpush1.xpose.msra.mxu0 0.0
    %384 = vmatprep.subr.mxu0 0.0
    %385 = vmatpush1.xpose.msra.mxu0 0.0
    %386 = vmatprep.subr.mxu0 0.0
    %387 = vmatpush1.xpose.msra.mxu0 0.0
    %388 = vmatprep.subr.mxu0 0.0
    %389 = vmatpush1.xpose.msra.mxu0 0.0
    %390 = vmatprep.subr.mxu0 0.0
    %391 = vmatpush1.xpose.msra.mxu0 0.0
    %392 = vmatprep.subr.mxu0 0.0
    %393 = vmatpush1.xpose.msra.mxu0 0.0
    %394 = vmatprep.subr.mxu0 0.0
    %395 = vmatpush1.xpose.msra.mxu0 0.0
    %396 = vmatprep.subr.mxu0 0.0
    %397 = vmatpush1.xpose.msra.mxu0 0.0
    %398 = vmatprep.subr.mxu0 0.0
    %399 = vmatpush1.xpose.msra.mxu0 0.0
    %400 = vmatprep.subr.mxu0 0.0
    %401 = vmatpush1.xpose.msra.mxu0 0.0
    %402 = vmatprep.subr.mxu0 0.0
    %403 = vmatpush1.xpose.msra.mxu0 0.0
    %404 = vmatprep.subr.mxu0 0.0
    %405 = vmatpush1.xpose.msra.mxu0 0.0
    %406 = vmatprep.subr.mxu0 0.0
    %407 = vmatpush1.xpose.msra.mxu0 0.0
    %408 = vmatprep.subr.mxu0 0.0
    %409 = vmatpush1.xpose.msra.mxu0 0.0
    %410 = vmatprep.subr.mxu0 0.0
    %411 = vmatpush1.xpose.msra.mxu0 %v378
    %412 = vmatprep.subr.mxu0 0.0
    %413 = vmatpush2.xpose.msra.mxu0 0.0
    %414 = vmatprep.subr.mxu0 0.0
    %415 = vmatpush2.xpose.msra.mxu0 0.0
    %416 = vmatprep.subr.mxu0 0.0
    %417 = vmatpush2.xpose.msra.mxu0 0.0
    %418 = vmatprep.subr.mxu0 0.0
    %419 = vmatpush2.xpose.msra.mxu0 0.0
    %420 = vmatprep.subr.mxu0 0.0
    %421 = vmatpush2.xpose.msra.mxu0 0.0
    %422 = vmatprep.subr.mxu0 0.0
    %423 = vmatpush2.xpose.msra.mxu0 0.0
    %424 = vmatprep.subr.mxu0 0.0
    %425 = vmatpush2.xpose.msra.mxu0 0.0
    %426 = vmatprep.subr.mxu0 0.0
    %427 = vmatpush2.xpose.msra.mxu0 0.0
    %428 = vmatprep.subr.mxu0 0.0
    %429 = vmatpush2.xpose.msra.mxu0 0.0
    %430 = vmatprep.subr.mxu0 0.0
    %431 = vmatpush2.xpose.msra.mxu0 0.0
    %432 = vmatprep.subr.mxu0 0.0
    %433 = vmatpush2.xpose.msra.mxu0 0.0
    %434 = vmatprep.subr.mxu0 0.0
    %435 = vmatpush2.xpose.msra.mxu0 0.0
    %436 = vmatprep.subr.mxu0 0.0
    %437 = vmatpush2.xpose.msra.mxu0 0.0
    %438 = vmatprep.subr.mxu0 0.0
    %439 = vmatpush2.xpose.msra.mxu0 0.0
    %440 = vmatprep.subr.mxu0 0.0
    %441 = vmatpush2.xpose.msra.mxu0 0.0
    %442 = vmatprep.subr.mxu0 0.0
    %443 = vmatpush2.xpose.msra.mxu0 0.0
    %444 = vmatprep.mubr.f32.mxu0 0.0
    %445 = vmatmul.mubr.f32.gmra.mxu0 %v375
    %v446 = vpop.f32.mrf.mxu0
    %v447 = vadd.f32 0.0, %v446
    %v448 = vpop.f32.mrf.mxu0
    %449 = vdwg.mxu0
    %450 = vst.msk [vmem:[#allocation13] sm:$0xff] %vm373, %v447
    %v451 = vsel %vm373, %v447, -inf
    %452 = vmax.xlane.f32.xlu0 %v451
    %v453 = vpop.xlane.xlu0 %452
    %v454 = vsub.f32 %v447, %v453
    %v455 = vmul.f32 %v454, 1.442695
    %v456 = vpow.pop %v455
    %v457 = vsel %vm373, %v456, 0.0
    %458 = vadd.xlane.f32.xlu0 %v457
    %v459 = vpop.xlane.xlu0 %458
    %v460 = vrcp.pop %v459
    %v461 = vmul.f32 %v456, %v460
    %v463 = vsel %vm373, %v461, 0
    %465 = vmatprep.subr.mxu0 0.0
    %466 = vmatpush1.msra.mxu0 0.0
    %467 = vmatprep.subr.mxu0 0.0
    %468 = vmatpush1.msra.mxu0 0.0
    %469 = vmatprep.subr.mxu0 0.0
    %470 = vmatpush1.msra.mxu0 0.0
    %471 = vmatprep.subr.mxu0 0.0
    %472 = vmatpush1.msra.mxu0 0.0
    %473 = vmatprep.subr.mxu0 0.0
    %474 = vmatpush1.msra.mxu0 0.0
    %475 = vmatprep.subr.mxu0 0.0
    %476 = vmatpush1.msra.mxu0 0.0
    %477 = vmatprep.subr.mxu0 0.0
    %478 = vmatpush1.msra.mxu0 0.0
    %479 = vmatprep.subr.mxu0 0.0
    %480 = vmatpush1.msra.mxu0 0.0
    %481 = vmatprep.subr.mxu0 0.0
    %482 = vmatpush1.msra.mxu0 0.0
    %483 = vmatprep.subr.mxu0 0.0
    %484 = vmatpush1.msra.mxu0 0.0
    %485 = vmatprep.subr.mxu0 0.0
    %486 = vmatpush1.msra.mxu0 0.0
    %487 = vmatprep.subr.mxu0 0.0
    %488 = vmatpush1.msra.mxu0 0.0
    %489 = vmatprep.subr.mxu0 0.0
    %490 = vmatpush1.msra.mxu0 0.0
    %491 = vmatprep.subr.mxu0 0.0
    %492 = vmatpush1.msra.mxu0 0.0
    %493 = vmatprep.subr.mxu0 0.0
    %494 = vmatpush1.msra.mxu0 0.0
    %495 = vmatprep.subr.mxu0 0.0
    %496 = vmatpush1.msra.mxu0 %v365
    %497 = vmatprep.subr.mxu0 0.0
    %498 = vmatpush2.msra.mxu0 0.0
    %499 = vmatprep.subr.mxu0 0.0
    %500 = vmatpush2.msra.mxu0 0.0
    %501 = vmatprep.subr.mxu0 0.0
    %502 = vmatpush2.msra.mxu0 0.0
    %503 = vmatprep.subr.mxu0 0.0
    %504 = vmatpush2.msra.mxu0 0.0
    %505 = vmatprep.subr.mxu0 0.0
    %506 = vmatpush2.msra.mxu0 0.0
    %507 = vmatprep.subr.mxu0 0.0
    %508 = vmatpush2.msra.mxu0 0.0
    %509 = vmatprep.subr.mxu0 0.0
    %510 = vmatpush2.msra.mxu0 0.0
    %511 = vmatprep.subr.mxu0 0.0
    %512 = vmatpush2.msra.mxu0 0.0
    %513 = vmatprep.subr.mxu0 0.0
    %514 = vmatpush2.msra.mxu0 0.0
    %515 = vmatprep.subr.mxu0 0.0
    %516 = vmatpush2.msra.mxu0 0.0
    %517 = vmatprep.subr.mxu0 0.0
    %518 = vmatpush2.msra.mxu0 0.0
    %519 = vmatprep.subr.mxu0 0.0
    %520 = vmatpush2.msra.mxu0 0.0
    %521 = vmatprep.subr.mxu0 0.0
    %522 = vmatpush2.msra.mxu0 0.0
    %523 = vmatprep.subr.mxu0 0.0
    %524 = vmatpush2.msra.mxu0 0.0
    %525 = vmatprep.subr.mxu0 0.0
    %526 = vmatpush2.msra.mxu0 0.0
    %527 = vmatprep.subr.mxu0 0.0
    %528 = vmatpush2.msra.mxu0 0.0
    %529 = vmatprep.mubr.f32.mxu0 0.0
    %530 = vmatmul.mubr.f32.gmra.mxu0 %v463
    %v531 = vpop.f32.mrf.mxu0
    %v532 = vadd.f32 0.0, %v531
    %v533 = vpop.f32.mrf.mxu0
    %534 = vdwg.mxu0
    %535 = vst.msk [vmem:[#allocation2] sm:$0xff] %vm373, %v532
    %536 = vrot.lane.b32.xlu0 %v199, 120
    %v537 = vpop.permute.xlu0 %536
    %538 = vrot.lane.b32.xlu0 %v279, 120
    %v539 = vpop.permute.xlu0 %538
    %v540 = vsel %vm373, %v537, 0
    %v542 = vsel %vm373, %v539, 0
    %544 = vmatprep.subr.mxu0 0.0
    %545 = vmatpush1.xpose.msra.mxu0 0.0
    %546 = vmatprep.subr.mxu0 0.0
    %547 = vmatpush1.xpose.msra.mxu0 0.0
    %548 = vmatprep.subr.mxu0 0.0
    %549 = vmatpush1.xpose.msra.mxu0 0.0
    %550 = vmatprep.subr.mxu0 0.0
    %551 = vmatpush1.xpose.msra.mxu0 0.0
    %552 = vmatprep.subr.mxu0 0.0
    %553 = vmatpush1.xpose.msra.mxu0 0.0
    %554 = vmatprep.subr.mxu0 0.0
    %555 = vmatpush1.xpose.msra.mxu0 0.0
    %556 = vmatprep.subr.mxu0 0.0
    %557 = vmatpush1.xpose.msra.mxu0 0.0
    %558 = vmatprep.subr.mxu0 0.0
    %559 = vmatpush1.xpose.msra.mxu0 0.0
    %560 = vmatprep.subr.mxu0 0.0
    %561 = vmatpush1.xpose.msra.mxu0 0.0
    %562 = vmatprep.subr.mxu0 0.0
    %563 = vmatpush1.xpose.msra.mxu0 0.0
    %564 = vmatprep.subr.mxu0 0.0
    %565 = vmatpush1.xpose.msra.mxu0 0.0
    %566 = vmatprep.subr.mxu0 0.0
    %567 = vmatpush1.xpose.msra.mxu0 0.0
    %568 = vmatprep.subr.mxu0 0.0
    %569 = vmatpush1.xpose.msra.mxu0 0.0
    %570 = vmatprep.subr.mxu0 0.0
    %571 = vmatpush1.xpose.msra.mxu0 0.0
    %572 = vmatprep.subr.mxu0 0.0
    %573 = vmatpush1.xpose.msra.mxu0 0.0
    %574 = vmatprep.subr.mxu0 0.0
    %575 = vmatpush1.xpose.msra.mxu0 %v542
    %576 = vmatprep.subr.mxu0 0.0
    %577 = vmatpush2.xpose.msra.mxu0 0.0
    %578 = vmatprep.subr.mxu0 0.0
    %579 = vmatpush2.xpose.msra.mxu0 0.0
    %580 = vmatprep.subr.mxu0 0.0
    %581 = vmatpush2.xpose.msra.mxu0 0.0
    %582 = vmatprep.subr.mxu0 0.0
    %583 = vmatpush2.xpose.msra.mxu0 0.0
    %584 = vmatprep.subr.mxu0 0.0
    %585 = vmatpush2.xpose.msra.mxu0 0.0
    %586 = vmatprep.subr.mxu0 0.0
    %587 = vmatpush2.xpose.msra.mxu0 0.0
    %588 = vmatprep.subr.mxu0 0.0
    %589 = vmatpush2.xpose.msra.mxu0 0.0
    %590 = vmatprep.subr.mxu0 0.0
    %591 = vmatpush2.xpose.msra.mxu0 0.0
    %592 = vmatprep.subr.mxu0 0.0
    %593 = vmatpush2.xpose.msra.mxu0 0.0
    %594 = vmatprep.subr.mxu0 0.0
    %595 = vmatpush2.xpose.msra.mxu0 0.0
    %596 = vmatprep.subr.mxu0 0.0
    %597 = vmatpush2.xpose.msra.mxu0 0.0
    %598 = vmatprep.subr.mxu0 0.0
    %599 = vmatpush2.xpose.msra.mxu0 0.0
    %600 = vmatprep.subr.mxu0 0.0
    %601 = vmatpush2.xpose.msra.mxu0 0.0
    %602 = vmatprep.subr.mxu0 0.0
    %603 = vmatpush2.xpose.msra.mxu0 0.0
    %604 = vmatprep.subr.mxu0 0.0
    %605 = vmatpush2.xpose.msra.mxu0 0.0
    %606 = vmatprep.subr.mxu0 0.0
    %607 = vmatpush2.xpose.msra.mxu0 0.0
    %608 = vmatprep.mubr.f32.mxu0 0.0
    %609 = vmatmul.mubr.f32.gmra.mxu0 %v540
    %v610 = vpop.f32.mrf.mxu0
    %v611 = vadd.f32 0.0, %v610
    %v612 = vpop.f32.mrf.mxu0
    %613 = vdwg.mxu0
    %s614 = scalar_lea.vmem [#allocation13], 16
    %615 = vst.msk [vmem:[%s614] sm:$0xff] %vm373, %v611
    %v616 = vsel %vm373, %v611, -inf
    %617 = vmax.xlane.f32.xlu0 %v616
    %v618 = vpop.xlane.xlu0 %617
    %v619 = vsub.f32 %v611, %v618
    %v620 = vmul.f32 %v619, 1.442695
    %v621 = vpow.pop %v620
    %v622 = vsel %vm373, %v621, 0.0
    %623 = vadd.xlane.f32.xlu0 %v622
    %v624 = vpop.xlane.xlu0 %623
    %v625 = vrcp.pop %v624
    %v626 = vmul.f32 %v621, %v625
    %628 = vrot.lane.b32.xlu0 %v365, 120
    %v629 = vpop.permute.xlu0 %628
    %v632 = vsel %vm373, %v626, 0
    %634 = vmatprep.subr.mxu0 0.0
    %635 = vmatpush1.msra.mxu0 0.0
    %636 = vmatprep.subr.mxu0 0.0
    %637 = vmatpush1.msra.mxu0 0.0
    %638 = vmatprep.subr.mxu0 0.0
    %639 = vmatpush1.msra.mxu0 0.0
    %640 = vmatprep.subr.mxu0 0.0
    %641 = vmatpush1.msra.mxu0 0.0
    %642 = vmatprep.subr.mxu0 0.0
    %643 = vmatpush1.msra.mxu0 0.0
    %644 = vmatprep.subr.mxu0 0.0
    %645 = vmatpush1.msra.mxu0 0.0
    %646 = vmatprep.subr.mxu0 0.0
    %647 = vmatpush1.msra.mxu0 0.0
    %648 = vmatprep.subr.mxu0 0.0
    %649 = vmatpush1.msra.mxu0 0.0
    %650 = vmatprep.subr.mxu0 0.0
    %651 = vmatpush1.msra.mxu0 0.0
    %652 = vmatprep.subr.mxu0 0.0
    %653 = vmatpush1.msra.mxu0 0.0
    %654 = vmatprep.subr.mxu0 0.0
    %655 = vmatpush1.msra.mxu0 0.0
    %656 = vmatprep.subr.mxu0 0.0
    %657 = vmatpush1.msra.mxu0 0.0
    %658 = vmatprep.subr.mxu0 0.0
    %659 = vmatpush1.msra.mxu0 0.0
    %660 = vmatprep.subr.mxu0 0.0
    %661 = vmatpush1.msra.mxu0 0.0
    %662 = vmatprep.subr.mxu0 0.0
    %663 = vmatpush1.msra.mxu0 0.0
    %664 = vmatprep.subr.mxu0 0.0
    %665 = vmatpush1.msra.mxu0 %v629
    %666 = vmatprep.subr.mxu0 0.0
    %667 = vmatpush2.msra.mxu0 0.0
    %668 = vmatprep.subr.mxu0 0.0
    %669 = vmatpush2.msra.mxu0 0.0
    %670 = vmatprep.subr.mxu0 0.0
    %671 = vmatpush2.msra.mxu0 0.0
    %672 = vmatprep.subr.mxu0 0.0
    %673 = vmatpush2.msra.mxu0 0.0
    %674 = vmatprep.subr.mxu0 0.0
    %675 = vmatpush2.msra.mxu0 0.0
    %676 = vmatprep.subr.mxu0 0.0
    %677 = vmatpush2.msra.mxu0 0.0
    %678 = vmatprep.subr.mxu0 0.0
    %679 = vmatpush2.msra.mxu0 0.0
    %680 = vmatprep.subr.mxu0 0.0
    %681 = vmatpush2.msra.mxu0 0.0
    %682 = vmatprep.subr.mxu0 0.0
    %683 = vmatpush2.msra.mxu0 0.0
    %684 = vmatprep.subr.mxu0 0.0
    %685 = vmatpush2.msra.mxu0 0.0
    %686 = vmatprep.subr.mxu0 0.0
    %687 = vmatpush2.msra.mxu0 0.0
    %688 = vmatprep.subr.mxu0 0.0
    %689 = vmatpush2.msra.mxu0 0.0
    %690 = vmatprep.subr.mxu0 0.0
    %691 = vmatpush2.msra.mxu0 0.0
    %692 = vmatprep.subr.mxu0 0.0
    %693 = vmatpush2.msra.mxu0 0.0
    %694 = vmatprep.subr.mxu0 0.0
    %695 = vmatpush2.msra.mxu0 0.0
    %696 = vmatprep.subr.mxu0 0.0
    %697 = vmatpush2.msra.mxu0 0.0
    %698 = vmatprep.mubr.f32.mxu0 0.0
    %699 = vmatmul.mubr.f32.gmra.mxu0 %v632
    %v700 = vpop.f32.mrf.mxu0
    %v701 = vadd.f32 0.0, %v700
    %v702 = vpop.f32.mrf.mxu0
    %703 = vdwg.mxu0
    %705 = vrot.lane.b32.xlu0 %v701, 8
    %v706 = vpop.permute.xlu0 %705
    %vm708 = vcmask 130112
    %709 = vst.msk [vmem:[#allocation2] sm:$0xff] %vm708, %v706
    %710 = vrot.lane.b32.xlu0 %v199, 112
    %v711 = vpop.permute.xlu0 %710
    %712 = vrot.lane.b32.xlu0 %v279, 112
    %v713 = vpop.permute.xlu0 %712
    %v714 = vsel %vm373, %v711, 0
    %v716 = vsel %vm373, %v713, 0
    %718 = vmatprep.subr.mxu0 0.0
    %719 = vmatpush1.xpose.msra.mxu0 0.0
    %720 = vmatprep.subr.mxu0 0.0
    %721 = vmatpush1.xpose.msra.mxu0 0.0
    %722 = vmatprep.subr.mxu0 0.0
    %723 = vmatpush1.xpose.msra.mxu0 0.0
    %724 = vmatprep.subr.mxu0 0.0
    %725 = vmatpush1.xpose.msra.mxu0 0.0
    %726 = vmatprep.subr.mxu0 0.0
    %727 = vmatpush1.xpose.msra.mxu0 0.0
    %728 = vmatprep.subr.mxu0 0.0
    %729 = vmatpush1.xpose.msra.mxu0 0.0
    %730 = vmatprep.subr.mxu0 0.0
    %731 = vmatpush1.xpose.msra.mxu0 0.0
    %732 = vmatprep.subr.mxu0 0.0
    %733 = vmatpush1.xpose.msra.mxu0 0.0
    %734 = vmatprep.subr.mxu0 0.0
    %735 = vmatpush1.xpose.msra.mxu0 0.0
    %736 = vmatprep.subr.mxu0 0.0
    %737 = vmatpush1.xpose.msra.mxu0 0.0
    %738 = vmatprep.subr.mxu0 0.0
    %739 = vmatpush1.xpose.msra.mxu0 0.0
    %740 = vmatprep.subr.mxu0 0.0
    %741 = vmatpush1.xpose.msra.mxu0 0.0
    %742 = vmatprep.subr.mxu0 0.0
    %743 = vmatpush1.xpose.msra.mxu0 0.0
    %744 = vmatprep.subr.mxu0 0.0
    %745 = vmatpush1.xpose.msra.mxu0 0.0
    %746 = vmatprep.subr.mxu0 0.0
    %747 = vmatpush1.xpose.msra.mxu0 0.0
    %748 = vmatprep.subr.mxu0 0.0
    %749 = vmatpush1.xpose.msra.mxu0 %v716
    %750 = vmatprep.subr.mxu0 0.0
    %751 = vmatpush2.xpose.msra.mxu0 0.0
    %752 = vmatprep.subr.mxu0 0.0
    %753 = vmatpush2.xpose.msra.mxu0 0.0
    %754 = vmatprep.subr.mxu0 0.0
    %755 = vmatpush2.xpose.msra.mxu0 0.0
    %756 = vmatprep.subr.mxu0 0.0
    %757 = vmatpush2.xpose.msra.mxu0 0.0
    %758 = vmatprep.subr.mxu0 0.0
    %759 = vmatpush2.xpose.msra.mxu0 0.0
    %760 = vmatprep.subr.mxu0 0.0
    %761 = vmatpush2.xpose.msra.mxu0 0.0
    %762 = vmatprep.subr.mxu0 0.0
    %763 = vmatpush2.xpose.msra.mxu0 0.0
    %764 = vmatprep.subr.mxu0 0.0
    %765 = vmatpush2.xpose.msra.mxu0 0.0
    %766 = vmatprep.subr.mxu0 0.0
    %767 = vmatpush2.xpose.msra.mxu0 0.0
    %768 = vmatprep.subr.mxu0 0.0
    %769 = vmatpush2.xpose.msra.mxu0 0.0
    %770 = vmatprep.subr.mxu0 0.0
    %771 = vmatpush2.xpose.msra.mxu0 0.0
    %772 = vmatprep.subr.mxu0 0.0
    %773 = vmatpush2.xpose.msra.mxu0 0.0
    %774 = vmatprep.subr.mxu0 0.0
    %775 = vmatpush2.xpose.msra.mxu0 0.0
    %776 = vmatprep.subr.mxu0 0.0
    %777 = vmatpush2.xpose.msra.mxu0 0.0
    %778 = vmatprep.subr.mxu0 0.0
    %779 = vmatpush2.xpose.msra.mxu0 0.0
    %780 = vmatprep.subr.mxu0 0.0
    %781 = vmatpush2.xpose.msra.mxu0 0.0
    %782 = vmatprep.mubr.f32.mxu0 0.0
    %783 = vmatmul.mubr.f32.gmra.mxu0 %v714
    %v784 = vpop.f32.mrf.mxu0
    %v785 = vadd.f32 0.0, %v784
    %v786 = vpop.f32.mrf.mxu0
    %787 = vdwg.mxu0
    %s788 = scalar_lea.vmem [#allocation13], 32
    %789 = vst.msk [vmem:[%s788] sm:$0xff] %vm373, %v785
    %v790 = vsel %vm373, %v785, -inf
    %791 = vmax.xlane.f32.xlu0 %v790
    %v792 = vpop.xlane.xlu0 %791
    %v793 = vsub.f32 %v785, %v792
    %v794 = vmul.f32 %v793, 1.442695
    %v795 = vpow.pop %v794
    %v796 = vsel %vm373, %v795, 0.0
    %797 = vadd.xlane.f32.xlu0 %v796
    %v798 = vpop.xlane.xlu0 %797
    %v799 = vrcp.pop %v798
    %v800 = vmul.f32 %v795, %v799
    %801 = vrot.lane.b32.xlu0 %v365, 112
    %v802 = vpop.permute.xlu0 %801
    %v805 = vsel %vm373, %v800, 0
    %807 = vmatprep.subr.mxu0 0.0
    %808 = vmatpush1.msra.mxu0 0.0
    %809 = vmatprep.subr.mxu0 0.0
    %810 = vmatpush1.msra.mxu0 0.0
    %811 = vmatprep.subr.mxu0 0.0
    %812 = vmatpush1.msra.mxu0 0.0
    %813 = vmatprep.subr.mxu0 0.0
    %814 = vmatpush1.msra.mxu0 0.0
    %815 = vmatprep.subr.mxu0 0.0
    %816 = vmatpush1.msra.mxu0 0.0
    %817 = vmatprep.subr.mxu0 0.0
    %818 = vmatpush1.msra.mxu0 0.0
    %819 = vmatprep.subr.mxu0 0.0
    %820 = vmatpush1.msra.mxu0 0.0
    %821 = vmatprep.subr.mxu0 0.0
    %822 = vmatpush1.msra.mxu0 0.0
    %823 = vmatprep.subr.mxu0 0.0
    %824 = vmatpush1.msra.mxu0 0.0
    %825 = vmatprep.subr.mxu0 0.0
    %826 = vmatpush1.msra.mxu0 0.0
    %827 = vmatprep.subr.mxu0 0.0
    %828 = vmatpush1.msra.mxu0 0.0
    %829 = vmatprep.subr.mxu0 0.0
    %830 = vmatpush1.msra.mxu0 0.0
    %831 = vmatprep.subr.mxu0 0.0
    %832 = vmatpush1.msra.mxu0 0.0
    %833 = vmatprep.subr.mxu0 0.0
    %834 = vmatpush1.msra.mxu0 0.0
    %835 = vmatprep.subr.mxu0 0.0
    %836 = vmatpush1.msra.mxu0 0.0
    %837 = vmatprep.subr.mxu0 0.0
    %838 = vmatpush1.msra.mxu0 %v802
    %839 = vmatprep.subr.mxu0 0.0
    %840 = vmatpush2.msra.mxu0 0.0
    %841 = vmatprep.subr.mxu0 0.0
    %842 = vmatpush2.msra.mxu0 0.0
    %843 = vmatprep.subr.mxu0 0.0
    %844 = vmatpush2.msra.mxu0 0.0
    %845 = vmatprep.subr.mxu0 0.0
    %846 = vmatpush2.msra.mxu0 0.0
    %847 = vmatprep.subr.mxu0 0.0
    %848 = vmatpush2.msra.mxu0 0.0
    %849 = vmatprep.subr.mxu0 0.0
    %850 = vmatpush2.msra.mxu0 0.0
    %851 = vmatprep.subr.mxu0 0.0
    %852 = vmatpush2.msra.mxu0 0.0
    %853 = vmatprep.subr.mxu0 0.0
    %854 = vmatpush2.msra.mxu0 0.0
    %855 = vmatprep.subr.mxu0 0.0
    %856 = vmatpush2.msra.mxu0 0.0
    %857 = vmatprep.subr.mxu0 0.0
    %858 = vmatpush2.msra.mxu0 0.0
    %859 = vmatprep.subr.mxu0 0.0
    %860 = vmatpush2.msra.mxu0 0.0
    %861 = vmatprep.subr.mxu0 0.0
    %862 = vmatpush2.msra.mxu0 0.0
    %863 = vmatprep.subr.mxu0 0.0
    %864 = vmatpush2.msra.mxu0 0.0
    %865 = vmatprep.subr.mxu0 0.0
    %866 = vmatpush2.msra.mxu0 0.0
    %867 = vmatprep.subr.mxu0 0.0
    %868 = vmatpush2.msra.mxu0 0.0
    %869 = vmatprep.subr.mxu0 0.0
    %870 = vmatpush2.msra.mxu0 0.0
    %871 = vmatprep.mubr.f32.mxu0 0.0
    %872 = vmatmul.mubr.f32.gmra.mxu0 %v805
    %v873 = vpop.f32.mrf.mxu0
    %v874 = vadd.f32 0.0, %v873
    %v875 = vpop.f32.mrf.mxu0
    %876 = vdwg.mxu0
    %878 = vrot.lane.b32.xlu0 %v874, 16
    %v879 = vpop.permute.xlu0 %878
    %vm881 = vcmask 195712
    %882 = vst.msk [vmem:[#allocation2] sm:$0xff] %vm881, %v879
    %883 = vrot.lane.b32.xlu0 %v199, 104
    %v884 = vpop.permute.xlu0 %883
    %885 = vrot.lane.b32.xlu0 %v279, 104
    %v886 = vpop.permute.xlu0 %885
    %v887 = vsel %vm373, %v884, 0
    %v889 = vsel %vm373, %v886, 0
    %891 = vmatprep.subr.mxu0 0.0
    %892 = vmatpush1.xpose.msra.mxu0 0.0
    %893 = vmatprep.subr.mxu0 0.0
    %894 = vmatpush1.xpose.msra.mxu0 0.0
    %895 = vmatprep.subr.mxu0 0.0
    %896 = vmatpush1.xpose.msra.mxu0 0.0
    %897 = vmatprep.subr.mxu0 0.0
    %898 = vmatpush1.xpose.msra.mxu0 0.0
    %899 = vmatprep.subr.mxu0 0.0
    %900 = vmatpush1.xpose.msra.mxu0 0.0
    %901 = vmatprep.subr.mxu0 0.0
    %902 = vmatpush1.xpose.msra.mxu0 0.0
    %903 = vmatprep.subr.mxu0 0.0
    %904 = vmatpush1.xpose.msra.mxu0 0.0
    %905 = vmatprep.subr.mxu0 0.0
    %906 = vmatpush1.xpose.msra.mxu0 0.0
    %907 = vmatprep.subr.mxu0 0.0
    %908 = vmatpush1.xpose.msra.mxu0 0.0
    %909 = vmatprep.subr.mxu0 0.0
    %910 = vmatpush1.xpose.msra.mxu0 0.0
    %911 = vmatprep.subr.mxu0 0.0
    %912 = vmatpush1.xpose.msra.mxu0 0.0
    %913 = vmatprep.subr.mxu0 0.0
    %914 = vmatpush1.xpose.msra.mxu0 0.0
    %915 = vmatprep.subr.mxu0 0.0
    %916 = vmatpush1.xpose.msra.mxu0 0.0
    %917 = vmatprep.subr.mxu0 0.0
    %918 = vmatpush1.xpose.msra.mxu0 0.0
    %919 = vmatprep.subr.mxu0 0.0
    %920 = vmatpush1.xpose.msra.mxu0 0.0
    %921 = vmatprep.subr.mxu0 0.0
    %922 = vmatpush1.xpose.msra.mxu0 %v889
    %923 = vmatprep.subr.mxu0 0.0
    %924 = vmatpush2.xpose.msra.mxu0 0.0
    %925 = vmatprep.subr.mxu0 0.0
    %926 = vmatpush2.xpose.msra.mxu0 0.0
    %927 = vmatprep.subr.mxu0 0.0
    %928 = vmatpush2.xpose.msra.mxu0 0.0
    %929 = vmatprep.subr.mxu0 0.0
    %930 = vmatpush2.xpose.msra.mxu0 0.0
    %931 = vmatprep.subr.mxu0 0.0
    %932 = vmatpush2.xpose.msra.mxu0 0.0
    %933 = vmatprep.subr.mxu0 0.0
    %934 = vmatpush2.xpose.msra.mxu0 0.0
    %935 = vmatprep.subr.mxu0 0.0
    %936 = vmatpush2.xpose.msra.mxu0 0.0
    %937 = vmatprep.subr.mxu0 0.0
    %938 = vmatpush2.xpose.msra.mxu0 0.0
    %939 = vmatprep.subr.mxu0 0.0
    %940 = vmatpush2.xpose.msra.mxu0 0.0
    %941 = vmatprep.subr.mxu0 0.0
    %942 = vmatpush2.xpose.msra.mxu0 0.0
    %943 = vmatprep.subr.mxu0 0.0
    %944 = vmatpush2.xpose.msra.mxu0 0.0
    %945 = vmatprep.subr.mxu0 0.0
    %946 = vmatpush2.xpose.msra.mxu0 0.0
    %947 = vmatprep.subr.mxu0 0.0
    %948 = vmatpush2.xpose.msra.mxu0 0.0
    %949 = vmatprep.subr.mxu0 0.0
    %950 = vmatpush2.xpose.msra.mxu0 0.0
    %951 = vmatprep.subr.mxu0 0.0
    %952 = vmatpush2.xpose.msra.mxu0 0.0
    %953 = vmatprep.subr.mxu0 0.0
    %954 = vmatpush2.xpose.msra.mxu0 0.0
    %955 = vmatprep.mubr.f32.mxu0 0.0
    %956 = vmatmul.mubr.f32.gmra.mxu0 %v887
    %v957 = vpop.f32.mrf.mxu0
    %v958 = vadd.f32 0.0, %v957
    %v959 = vpop.f32.mrf.mxu0
    %960 = vdwg.mxu0
    %s961 = scalar_lea.vmem [#allocation13], 48
    %962 = vst.msk [vmem:[%s961] sm:$0xff] %vm373, %v958
    %v963 = vsel %vm373, %v958, -inf
    %964 = vmax.xlane.f32.xlu0 %v963
    %v965 = vpop.xlane.xlu0 %964
    %v966 = vsub.f32 %v958, %v965
    %v967 = vmul.f32 %v966, 1.442695
    %v968 = vpow.pop %v967
    %v969 = vsel %vm373, %v968, 0.0
    %970 = vadd.xlane.f32.xlu0 %v969
    %v971 = vpop.xlane.xlu0 %970
    %v972 = vrcp.pop %v971
    %v973 = vmul.f32 %v968, %v972
    %974 = vrot.lane.b32.xlu0 %v365, 104
    %v975 = vpop.permute.xlu0 %974
    %v978 = vsel %vm373, %v973, 0
    %980 = vmatprep.subr.mxu0 0.0
    %981 = vmatpush1.msra.mxu0 0.0
    %982 = vmatprep.subr.mxu0 0.0
    %983 = vmatpush1.msra.mxu0 0.0
    %984 = vmatprep.subr.mxu0 0.0
    %985 = vmatpush1.msra.mxu0 0.0
    %986 = vmatprep.subr.mxu0 0.0
    %987 = vmatpush1.msra.mxu0 0.0
    %988 = vmatprep.subr.mxu0 0.0
    %989 = vmatpush1.msra.mxu0 0.0
    %990 = vmatprep.subr.mxu0 0.0
    %991 = vmatpush1.msra.mxu0 0.0
    %992 = vmatprep.subr.mxu0 0.0
    %993 = vmatpush1.msra.mxu0 0.0
    %994 = vmatprep.subr.mxu0 0.0
    %995 = vmatpush1.msra.mxu0 0.0
    %996 = vmatprep.subr.mxu0 0.0
    %997 = vmatpush1.msra.mxu0 0.0
    %998 = vmatprep.subr.mxu0 0.0
    %999 = vmatpush1.msra.mxu0 0.0
    %1000 = vmatprep.subr.mxu0 0.0
    %1001 = vmatpush1.msra.mxu0 0.0
    %1002 = vmatprep.subr.mxu0 0.0
    %1003 = vmatpush1.msra.mxu0 0.0
    %1004 = vmatprep.subr.mxu0 0.0
    %1005 = vmatpush1.msra.mxu0 0.0
    %1006 = vmatprep.subr.mxu0 0.0
    %1007 = vmatpush1.msra.mxu0 0.0
    %1008 = vmatprep.subr.mxu0 0.0
    %1009 = vmatpush1.msra.mxu0 0.0
    %1010 = vmatprep.subr.mxu0 0.0
    %1011 = vmatpush1.msra.mxu0 %v975
    %1012 = vmatprep.subr.mxu0 0.0
    %1013 = vmatpush2.msra.mxu0 0.0
    %1014 = vmatprep.subr.mxu0 0.0
    %1015 = vmatpush2.msra.mxu0 0.0
    %1016 = vmatprep.subr.mxu0 0.0
    %1017 = vmatpush2.msra.mxu0 0.0
    %1018 = vmatprep.subr.mxu0 0.0
    %1019 = vmatpush2.msra.mxu0 0.0
    %1020 = vmatprep.subr.mxu0 0.0
    %1021 = vmatpush2.msra.mxu0 0.0
    %1022 = vmatprep.subr.mxu0 0.0
    %1023 = vmatpush2.msra.mxu0 0.0
    %1024 = vmatprep.subr.mxu0 0.0
    %1025 = vmatpush2.msra.mxu0 0.0
    %1026 = vmatprep.subr.mxu0 0.0
    %1027 = vmatpush2.msra.mxu0 0.0
    %1028 = vmatprep.subr.mxu0 0.0
    %1029 = vmatpush2.msra.mxu0 0.0
    %1030 = vmatprep.subr.mxu0 0.0
    %1031 = vmatpush2.msra.mxu0 0.0
    %1032 = vmatprep.subr.mxu0 0.0
    %1033 = vmatpush2.msra.mxu0 0.0
    %1034 = vmatprep.subr.mxu0 0.0
    %1035 = vmatpush2.msra.mxu0 0.0
    %1036 = vmatprep.subr.mxu0 0.0
    %1037 = vmatpush2.msra.mxu0 0.0
    %1038 = vmatprep.subr.mxu0 0.0
    %1039 = vmatpush2.msra.mxu0 0.0
    %1040 = vmatprep.subr.mxu0 0.0
    %1041 = vmatpush2.msra.mxu0 0.0
    %1042 = vmatprep.subr.mxu0 0.0
    %1043 = vmatpush2.msra.mxu0 0.0
    %1044 = vmatprep.mubr.f32.mxu0 0.0
    %1045 = vmatmul.mubr.f32.gmra.mxu0 %v978
    %v1046 = vpop.f32.mrf.mxu0
    %v1047 = vadd.f32 0.0, %v1046
    %v1048 = vpop.f32.mrf.mxu0
    %1049 = vdwg.mxu0
    %1051 = vrot.lane.b32.xlu0 %v1047, 24
    %v1052 = vpop.permute.xlu0 %1051
    %vm1054 = vcmask 261312
    %1055 = vst.msk [vmem:[#allocation2] sm:$0xff] %vm1054, %v1052
    %v1057 = vsel %vm373, %v200, 0
    %v1060 = vsel %vm373, %v284, 0
    %1062 = vmatprep.subr.mxu0 0.0
    %1063 = vmatpush1.xpose.msra.mxu0 0.0
    %1064 = vmatprep.subr.mxu0 0.0
    %1065 = vmatpush1.xpose.msra.mxu0 0.0
    %1066 = vmatprep.subr.mxu0 0.0
    %1067 = vmatpush1.xpose.msra.mxu0 0.0
    %1068 = vmatprep.subr.mxu0 0.0
    %1069 = vmatpush1.xpose.msra.mxu0 0.0
    %1070 = vmatprep.subr.mxu0 0.0
    %1071 = vmatpush1.xpose.msra.mxu0 0.0
    %1072 = vmatprep.subr.mxu0 0.0
    %1073 = vmatpush1.xpose.msra.mxu0 0.0
    %1074 = vmatprep.subr.mxu0 0.0
    %1075 = vmatpush1.xpose.msra.mxu0 0.0
    %1076 = vmatprep.subr.mxu0 0.0
    %1077 = vmatpush1.xpose.msra.mxu0 0.0
    %1078 = vmatprep.subr.mxu0 0.0
    %1079 = vmatpush1.xpose.msra.mxu0 0.0
    %1080 = vmatprep.subr.mxu0 0.0
    %1081 = vmatpush1.xpose.msra.mxu0 0.0
    %1082 = vmatprep.subr.mxu0 0.0
    %1083 = vmatpush1.xpose.msra.mxu0 0.0
    %1084 = vmatprep.subr.mxu0 0.0
    %1085 = vmatpush1.xpose.msra.mxu0 0.0
    %1086 = vmatprep.subr.mxu0 0.0
    %1087 = vmatpush1.xpose.msra.mxu0 0.0
    %1088 = vmatprep.subr.mxu0 0.0
    %1089 = vmatpush1.xpose.msra.mxu0 0.0
    %1090 = vmatprep.subr.mxu0 0.0
    %1091 = vmatpush1.xpose.msra.mxu0 0.0
    %1092 = vmatprep.subr.mxu0 0.0
    %1093 = vmatpush1.xpose.msra.mxu0 %v1060
    %1094 = vmatprep.subr.mxu0 0.0
    %1095 = vmatpush2.xpose.msra.mxu0 0.0
    %1096 = vmatprep.subr.mxu0 0.0
    %1097 = vmatpush2.xpose.msra.mxu0 0.0
    %1098 = vmatprep.subr.mxu0 0.0
    %1099 = vmatpush2.xpose.msra.mxu0 0.0
    %1100 = vmatprep.subr.mxu0 0.0
    %1101 = vmatpush2.xpose.msra.mxu0 0.0
    %1102 = vmatprep.subr.mxu0 0.0
    %1103 = vmatpush2.xpose.msra.mxu0 0.0
    %1104 = vmatprep.subr.mxu0 0.0
    %1105 = vmatpush2.xpose.msra.mxu0 0.0
    %1106 = vmatprep.subr.mxu0 0.0
    %1107 = vmatpush2.xpose.msra.mxu0 0.0
    %1108 = vmatprep.subr.mxu0 0.0
    %1109 = vmatpush2.xpose.msra.mxu0 0.0
    %1110 = vmatprep.subr.mxu0 0.0
    %1111 = vmatpush2.xpose.msra.mxu0 0.0
    %1112 = vmatprep.subr.mxu0 0.0
    %1113 = vmatpush2.xpose.msra.mxu0 0.0
    %1114 = vmatprep.subr.mxu0 0.0
    %1115 = vmatpush2.xpose.msra.mxu0 0.0
    %1116 = vmatprep.subr.mxu0 0.0
    %1117 = vmatpush2.xpose.msra.mxu0 0.0
    %1118 = vmatprep.subr.mxu0 0.0
    %1119 = vmatpush2.xpose.msra.mxu0 0.0
    %1120 = vmatprep.subr.mxu0 0.0
    %1121 = vmatpush2.xpose.msra.mxu0 0.0
    %1122 = vmatprep.subr.mxu0 0.0
    %1123 = vmatpush2.xpose.msra.mxu0 0.0
    %1124 = vmatprep.subr.mxu0 0.0
    %1125 = vmatpush2.xpose.msra.mxu0 0.0
    %1126 = vmatprep.mubr.f32.mxu0 0.0
    %1127 = vmatmul.mubr.f32.gmra.mxu0 %v1057
    %v1128 = vpop.f32.mrf.mxu0
    %v1129 = vadd.f32 0.0, %v1128
    %v1130 = vpop.f32.mrf.mxu0
    %1131 = vdwg.mxu0
    %s1132 = scalar_lea.vmem [#allocation13], 8
    %1133 = vst.msk [vmem:[%s1132] sm:$0xff] %vm373, %v1129
    %v1134 = vsel %vm373, %v1129, -inf
    %1135 = vmax.xlane.f32.xlu0 %v1134
    %v1136 = vpop.xlane.xlu0 %1135
    %v1137 = vsub.f32 %v1129, %v1136
    %v1138 = vmul.f32 %v1137, 1.442695
    %v1139 = vpow.pop %v1138
    %v1140 = vsel %vm373, %v1139, 0.0
    %1141 = vadd.xlane.f32.xlu0 %v1140
    %v1142 = vpop.xlane.xlu0 %1141
    %v1143 = vrcp.pop %v1142
    %v1144 = vmul.f32 %v1139, %v1143
    %v1146 = vsel %vm373, %v1144, 0
    %1148 = vmatprep.subr.mxu0 0.0
    %1149 = vmatpush1.msra.mxu0 0.0
    %1150 = vmatprep.subr.mxu0 0.0
    %1151 = vmatpush1.msra.mxu0 0.0
    %1152 = vmatprep.subr.mxu0 0.0
    %1153 = vmatpush1.msra.mxu0 0.0
    %1154 = vmatprep.subr.mxu0 0.0
    %1155 = vmatpush1.msra.mxu0 0.0
    %1156 = vmatprep.subr.mxu0 0.0
    %1157 = vmatpush1.msra.mxu0 0.0
    %1158 = vmatprep.subr.mxu0 0.0
    %1159 = vmatpush1.msra.mxu0 0.0
    %1160 = vmatprep.subr.mxu0 0.0
    %1161 = vmatpush1.msra.mxu0 0.0
    %1162 = vmatprep.subr.mxu0 0.0
    %1163 = vmatpush1.msra.mxu0 0.0
    %1164 = vmatprep.subr.mxu0 0.0
    %1165 = vmatpush1.msra.mxu0 0.0
    %1166 = vmatprep.subr.mxu0 0.0
    %1167 = vmatpush1.msra.mxu0 0.0
    %1168 = vmatprep.subr.mxu0 0.0
    %1169 = vmatpush1.msra.mxu0 0.0
    %1170 = vmatprep.subr.mxu0 0.0
    %1171 = vmatpush1.msra.mxu0 0.0
    %1172 = vmatprep.subr.mxu0 0.0
    %1173 = vmatpush1.msra.mxu0 0.0
    %1174 = vmatprep.subr.mxu0 0.0
    %1175 = vmatpush1.msra.mxu0 0.0
    %1176 = vmatprep.subr.mxu0 0.0
    %1177 = vmatpush1.msra.mxu0 0.0
    %1178 = vmatprep.subr.mxu0 0.0
    %1179 = vmatpush1.msra.mxu0 %v370
    %1180 = vmatprep.subr.mxu0 0.0
    %1181 = vmatpush2.msra.mxu0 0.0
    %1182 = vmatprep.subr.mxu0 0.0
    %1183 = vmatpush2.msra.mxu0 0.0
    %1184 = vmatprep.subr.mxu0 0.0
    %1185 = vmatpush2.msra.mxu0 0.0
    %1186 = vmatprep.subr.mxu0 0.0
    %1187 = vmatpush2.msra.mxu0 0.0
    %1188 = vmatprep.subr.mxu0 0.0
    %1189 = vmatpush2.msra.mxu0 0.0
    %1190 = vmatprep.subr.mxu0 0.0
    %1191 = vmatpush2.msra.mxu0 0.0
    %1192 = vmatprep.subr.mxu0 0.0
    %1193 = vmatpush2.msra.mxu0 0.0
    %1194 = vmatprep.subr.mxu0 0.0
    %1195 = vmatpush2.msra.mxu0 0.0
    %1196 = vmatprep.subr.mxu0 0.0
    %1197 = vmatpush2.msra.mxu0 0.0
    %1198 = vmatprep.subr.mxu0 0.0
    %1199 = vmatpush2.msra.mxu0 0.0
    %1200 = vmatprep.subr.mxu0 0.0
    %1201 = vmatpush2.msra.mxu0 0.0
    %1202 = vmatprep.subr.mxu0 0.0
    %1203 = vmatpush2.msra.mxu0 0.0
    %1204 = vmatprep.subr.mxu0 0.0
    %1205 = vmatpush2.msra.mxu0 0.0
    %1206 = vmatprep.subr.mxu0 0.0
    %1207 = vmatpush2.msra.mxu0 0.0
    %1208 = vmatprep.subr.mxu0 0.0
    %1209 = vmatpush2.msra.mxu0 0.0
    %1210 = vmatprep.subr.mxu0 0.0
    %1211 = vmatpush2.msra.mxu0 0.0
    %1212 = vmatprep.mubr.f32.mxu0 0.0
    %1213 = vmatmul.mubr.f32.gmra.mxu0 %v1146
    %v1214 = vpop.f32.mrf.mxu0
    %v1215 = vadd.f32 0.0, %v1214
    %v1216 = vpop.f32.mrf.mxu0
    %1217 = vdwg.mxu0
    %1218 = vst.msk [vmem:[#allocation2 + $0x8] sm:$0xff] %vm373, %v1215
    %1219 = vrot.lane.b32.xlu0 %v200, 120
    %v1220 = vpop.permute.xlu0 %1219
    %1221 = vrot.lane.b32.xlu0 %v284, 120
    %v1222 = vpop.permute.xlu0 %1221
    %v1223 = vsel %vm373, %v1220, 0
    %v1225 = vsel %vm373, %v1222, 0
    %1227 = vmatprep.subr.mxu0 0.0
    %1228 = vmatpush1.xpose.msra.mxu0 0.0
    %1229 = vmatprep.subr.mxu0 0.0
    %1230 = vmatpush1.xpose.msra.mxu0 0.0
    %1231 = vmatprep.subr.mxu0 0.0
    %1232 = vmatpush1.xpose.msra.mxu0 0.0
    %1233 = vmatprep.subr.mxu0 0.0
    %1234 = vmatpush1.xpose.msra.mxu0 0.0
    %1235 = vmatprep.subr.mxu0 0.0
    %1236 = vmatpush1.xpose.msra.mxu0 0.0
    %1237 = vmatprep.subr.mxu0 0.0
    %1238 = vmatpush1.xpose.msra.mxu0 0.0
    %1239 = vmatprep.subr.mxu0 0.0
    %1240 = vmatpush1.xpose.msra.mxu0 0.0
    %1241 = vmatprep.subr.mxu0 0.0
    %1242 = vmatpush1.xpose.msra.mxu0 0.0
    %1243 = vmatprep.subr.mxu0 0.0
    %1244 = vmatpush1.xpose.msra.mxu0 0.0
    %1245 = vmatprep.subr.mxu0 0.0
    %1246 = vmatpush1.xpose.msra.mxu0 0.0
    %1247 = vmatprep.subr.mxu0 0.0
    %1248 = vmatpush1.xpose.msra.mxu0 0.0
    %1249 = vmatprep.subr.mxu0 0.0
    %1250 = vmatpush1.xpose.msra.mxu0 0.0
    %1251 = vmatprep.subr.mxu0 0.0
    %1252 = vmatpush1.xpose.msra.mxu0 0.0
    %1253 = vmatprep.subr.mxu0 0.0
    %1254 = vmatpush1.xpose.msra.mxu0 0.0
    %1255 = vmatprep.subr.mxu0 0.0
    %1256 = vmatpush1.xpose.msra.mxu0 0.0
    %1257 = vmatprep.subr.mxu0 0.0
    %1258 = vmatpush1.xpose.msra.mxu0 %v1225
    %1259 = vmatprep.subr.mxu0 0.0
    %1260 = vmatpush2.xpose.msra.mxu0 0.0
    %1261 = vmatprep.subr.mxu0 0.0
    %1262 = vmatpush2.xpose.msra.mxu0 0.0
    %1263 = vmatprep.subr.mxu0 0.0
    %1264 = vmatpush2.xpose.msra.mxu0 0.0
    %1265 = vmatprep.subr.mxu0 0.0
    %1266 = vmatpush2.xpose.msra.mxu0 0.0
    %1267 = vmatprep.subr.mxu0 0.0
    %1268 = vmatpush2.xpose.msra.mxu0 0.0
    %1269 = vmatprep.subr.mxu0 0.0
    %1270 = vmatpush2.xpose.msra.mxu0 0.0
    %1271 = vmatprep.subr.mxu0 0.0
    %1272 = vmatpush2.xpose.msra.mxu0 0.0
    %1273 = vmatprep.subr.mxu0 0.0
    %1274 = vmatpush2.xpose.msra.mxu0 0.0
    %1275 = vmatprep.subr.mxu0 0.0
    %1276 = vmatpush2.xpose.msra.mxu0 0.0
    %1277 = vmatprep.subr.mxu0 0.0
    %1278 = vmatpush2.xpose.msra.mxu0 0.0
    %1279 = vmatprep.subr.mxu0 0.0
    %1280 = vmatpush2.xpose.msra.mxu0 0.0
    %1281 = vmatprep.subr.mxu0 0.0
    %1282 = vmatpush2.xpose.msra.mxu0 0.0
    %1283 = vmatprep.subr.mxu0 0.0
    %1284 = vmatpush2.xpose.msra.mxu0 0.0
    %1285 = vmatprep.subr.mxu0 0.0
    %1286 = vmatpush2.xpose.msra.mxu0 0.0
    %1287 = vmatprep.subr.mxu0 0.0
    %1288 = vmatpush2.xpose.msra.mxu0 0.0
    %1289 = vmatprep.subr.mxu0 0.0
    %1290 = vmatpush2.xpose.msra.mxu0 0.0
    %1291 = vmatprep.mubr.f32.mxu0 0.0
    %1292 = vmatmul.mubr.f32.gmra.mxu0 %v1223
    %v1293 = vpop.f32.mrf.mxu0
    %v1294 = vadd.f32 0.0, %v1293
    %v1295 = vpop.f32.mrf.mxu0
    %1296 = vdwg.mxu0
    %s1297 = scalar_lea.vmem [#allocation13], 24
    %1298 = vst.msk [vmem:[%s1297] sm:$0xff] %vm373, %v1294
    %v1299 = vsel %vm373, %v1294, -inf
    %1300 = vmax.xlane.f32.xlu0 %v1299
    %v1301 = vpop.xlane.xlu0 %1300
    %v1302 = vsub.f32 %v1294, %v1301
    %v1303 = vmul.f32 %v1302, 1.442695
    %v1304 = vpow.pop %v1303
    %v1305 = vsel %vm373, %v1304, 0.0
    %1306 = vadd.xlane.f32.xlu0 %v1305
    %v1307 = vpop.xlane.xlu0 %1306
    %v1308 = vrcp.pop %v1307
    %v1309 = vmul.f32 %v1304, %v1308
    %1311 = vrot.lane.b32.xlu0 %v370, 120
    %v1312 = vpop.permute.xlu0 %1311
    %v1315 = vsel %vm373, %v1309, 0
    %1317 = vmatprep.subr.mxu0 0.0
    %1318 = vmatpush1.msra.mxu0 0.0
    %1319 = vmatprep.subr.mxu0 0.0
    %1320 = vmatpush1.msra.mxu0 0.0
    %1321 = vmatprep.subr.mxu0 0.0
    %1322 = vmatpush1.msra.mxu0 0.0
    %1323 = vmatprep.subr.mxu0 0.0
    %1324 = vmatpush1.msra.mxu0 0.0
    %1325 = vmatprep.subr.mxu0 0.0
    %1326 = vmatpush1.msra.mxu0 0.0
    %1327 = vmatprep.subr.mxu0 0.0
    %1328 = vmatpush1.msra.mxu0 0.0
    %1329 = vmatprep.subr.mxu0 0.0
    %1330 = vmatpush1.msra.mxu0 0.0
    %1331 = vmatprep.subr.mxu0 0.0
    %1332 = vmatpush1.msra.mxu0 0.0
    %1333 = vmatprep.subr.mxu0 0.0
    %1334 = vmatpush1.msra.mxu0 0.0
    %1335 = vmatprep.subr.mxu0 0.0
    %1336 = vmatpush1.msra.mxu0 0.0
    %1337 = vmatprep.subr.mxu0 0.0
    %1338 = vmatpush1.msra.mxu0 0.0
    %1339 = vmatprep.subr.mxu0 0.0
    %1340 = vmatpush1.msra.mxu0 0.0
    %1341 = vmatprep.subr.mxu0 0.0
    %1342 = vmatpush1.msra.mxu0 0.0
    %1343 = vmatprep.subr.mxu0 0.0
    %1344 = vmatpush1.msra.mxu0 0.0
    %1345 = vmatprep.subr.mxu0 0.0
    %1346 = vmatpush1.msra.mxu0 0.0
    %1347 = vmatprep.subr.mxu0 0.0
    %1348 = vmatpush1.msra.mxu0 %v1312
    %1349 = vmatprep.subr.mxu0 0.0
    %1350 = vmatpush2.msra.mxu0 0.0
    %1351 = vmatprep.subr.mxu0 0.0
    %1352 = vmatpush2.msra.mxu0 0.0
    %1353 = vmatprep.subr.mxu0 0.0
    %1354 = vmatpush2.msra.mxu0 0.0
    %1355 = vmatprep.subr.mxu0 0.0
    %1356 = vmatpush2.msra.mxu0 0.0
    %1357 = vmatprep.subr.mxu0 0.0
    %1358 = vmatpush2.msra.mxu0 0.0
    %1359 = vmatprep.subr.mxu0 0.0
    %1360 = vmatpush2.msra.mxu0 0.0
    %1361 = vmatprep.subr.mxu0 0.0
    %1362 = vmatpush2.msra.mxu0 0.0
    %1363 = vmatprep.subr.mxu0 0.0
    %1364 = vmatpush2.msra.mxu0 0.0
    %1365 = vmatprep.subr.mxu0 0.0
    %1366 = vmatpush2.msra.mxu0 0.0
    %1367 = vmatprep.subr.mxu0 0.0
    %1368 = vmatpush2.msra.mxu0 0.0
    %1369 = vmatprep.subr.mxu0 0.0
    %1370 = vmatpush2.msra.mxu0 0.0
    %1371 = vmatprep.subr.mxu0 0.0
    %1372 = vmatpush2.msra.mxu0 0.0
    %1373 = vmatprep.subr.mxu0 0.0
    %1374 = vmatpush2.msra.mxu0 0.0
    %1375 = vmatprep.subr.mxu0 0.0
    %1376 = vmatpush2.msra.mxu0 0.0
    %1377 = vmatprep.subr.mxu0 0.0
    %1378 = vmatpush2.msra.mxu0 0.0
    %1379 = vmatprep.subr.mxu0 0.0
    %1380 = vmatpush2.msra.mxu0 0.0
    %1381 = vmatprep.mubr.f32.mxu0 0.0
    %1382 = vmatmul.mubr.f32.gmra.mxu0 %v1315
    %v1383 = vpop.f32.mrf.mxu0
    %v1384 = vadd.f32 0.0, %v1383
    %v1385 = vpop.f32.mrf.mxu0
    %1386 = vdwg.mxu0
    %1388 = vrot.lane.b32.xlu0 %v1384, 8
    %v1389 = vpop.permute.xlu0 %1388
    %1391 = vst.msk [vmem:[#allocation2 + $0x8] sm:$0xff] %vm708, %v1389
    %1392 = vrot.lane.b32.xlu0 %v200, 112
    %v1393 = vpop.permute.xlu0 %1392
    %1394 = vrot.lane.b32.xlu0 %v284, 112
    %v1395 = vpop.permute.xlu0 %1394
    %v1396 = vsel %vm373, %v1393, 0
    %v1398 = vsel %vm373, %v1395, 0
    %1400 = vmatprep.subr.mxu0 0.0
    %1401 = vmatpush1.xpose.msra.mxu0 0.0
    %1402 = vmatprep.subr.mxu0 0.0
    %1403 = vmatpush1.xpose.msra.mxu0 0.0
    %1404 = vmatprep.subr.mxu0 0.0
    %1405 = vmatpush1.xpose.msra.mxu0 0.0
    %1406 = vmatprep.subr.mxu0 0.0
    %1407 = vmatpush1.xpose.msra.mxu0 0.0
    %1408 = vmatprep.subr.mxu0 0.0
    %1409 = vmatpush1.xpose.msra.mxu0 0.0
    %1410 = vmatprep.subr.mxu0 0.0
    %1411 = vmatpush1.xpose.msra.mxu0 0.0
    %1412 = vmatprep.subr.mxu0 0.0
    %1413 = vmatpush1.xpose.msra.mxu0 0.0
    %1414 = vmatprep.subr.mxu0 0.0
    %1415 = vmatpush1.xpose.msra.mxu0 0.0
    %1416 = vmatprep.subr.mxu0 0.0
    %1417 = vmatpush1.xpose.msra.mxu0 0.0
    %1418 = vmatprep.subr.mxu0 0.0
    %1419 = vmatpush1.xpose.msra.mxu0 0.0
    %1420 = vmatprep.subr.mxu0 0.0
    %1421 = vmatpush1.xpose.msra.mxu0 0.0
    %1422 = vmatprep.subr.mxu0 0.0
    %1423 = vmatpush1.xpose.msra.mxu0 0.0
    %1424 = vmatprep.subr.mxu0 0.0
    %1425 = vmatpush1.xpose.msra.mxu0 0.0
    %1426 = vmatprep.subr.mxu0 0.0
    %1427 = vmatpush1.xpose.msra.mxu0 0.0
    %1428 = vmatprep.subr.mxu0 0.0
    %1429 = vmatpush1.xpose.msra.mxu0 0.0
    %1430 = vmatprep.subr.mxu0 0.0
    %1431 = vmatpush1.xpose.msra.mxu0 %v1398
    %1432 = vmatprep.subr.mxu0 0.0
    %1433 = vmatpush2.xpose.msra.mxu0 0.0
    %1434 = vmatprep.subr.mxu0 0.0
    %1435 = vmatpush2.xpose.msra.mxu0 0.0
    %1436 = vmatprep.subr.mxu0 0.0
    %1437 = vmatpush2.xpose.msra.mxu0 0.0
    %1438 = vmatprep.subr.mxu0 0.0
    %1439 = vmatpush2.xpose.msra.mxu0 0.0
    %1440 = vmatprep.subr.mxu0 0.0
    %1441 = vmatpush2.xpose.msra.mxu0 0.0
    %1442 = vmatprep.subr.mxu0 0.0
    %1443 = vmatpush2.xpose.msra.mxu0 0.0
    %1444 = vmatprep.subr.mxu0 0.0
    %1445 = vmatpush2.xpose.msra.mxu0 0.0
    %1446 = vmatprep.subr.mxu0 0.0
    %1447 = vmatpush2.xpose.msra.mxu0 0.0
    %1448 = vmatprep.subr.mxu0 0.0
    %1449 = vmatpush2.xpose.msra.mxu0 0.0
    %1450 = vmatprep.subr.mxu0 0.0
    %1451 = vmatpush2.xpose.msra.mxu0 0.0
    %1452 = vmatprep.subr.mxu0 0.0
    %1453 = vmatpush2.xpose.msra.mxu0 0.0
    %1454 = vmatprep.subr.mxu0 0.0
    %1455 = vmatpush2.xpose.msra.mxu0 0.0
    %1456 = vmatprep.subr.mxu0 0.0
    %1457 = vmatpush2.xpose.msra.mxu0 0.0
    %1458 = vmatprep.subr.mxu0 0.0
    %1459 = vmatpush2.xpose.msra.mxu0 0.0
    %1460 = vmatprep.subr.mxu0 0.0
    %1461 = vmatpush2.xpose.msra.mxu0 0.0
    %1462 = vmatprep.subr.mxu0 0.0
    %1463 = vmatpush2.xpose.msra.mxu0 0.0
    %1464 = vmatprep.mubr.f32.mxu0 0.0
    %1465 = vmatmul.mubr.f32.gmra.mxu0 %v1396
    %v1466 = vpop.f32.mrf.mxu0
    %v1467 = vadd.f32 0.0, %v1466
    %v1468 = vpop.f32.mrf.mxu0
    %1469 = vdwg.mxu0
    %s1470 = scalar_lea.vmem [#allocation13], 40
    %1471 = vst.msk [vmem:[%s1470] sm:$0xff] %vm373, %v1467
    %v1472 = vsel %vm373, %v1467, -inf
    %1473 = vmax.xlane.f32.xlu0 %v1472
    %v1474 = vpop.xlane.xlu0 %1473
    %v1475 = vsub.f32 %v1467, %v1474
    %v1476 = vmul.f32 %v1475, 1.442695
    %v1477 = vpow.pop %v1476
    %v1478 = vsel %vm373, %v1477, 0.0
    %1479 = vadd.xlane.f32.xlu0 %v1478
    %v1480 = vpop.xlane.xlu0 %1479
    %v1481 = vrcp.pop %v1480
    %v1482 = vmul.f32 %v1477, %v1481
    %1483 = vrot.lane.b32.xlu0 %v370, 112
    %v1484 = vpop.permute.xlu0 %1483
    %v1487 = vsel %vm373, %v1482, 0
    %1489 = vmatprep.subr.mxu0 0.0
    %1490 = vmatpush1.msra.mxu0 0.0
    %1491 = vmatprep.subr.mxu0 0.0
    %1492 = vmatpush1.msra.mxu0 0.0
    %1493 = vmatprep.subr.mxu0 0.0
    %1494 = vmatpush1.msra.mxu0 0.0
    %1495 = vmatprep.subr.mxu0 0.0
    %1496 = vmatpush1.msra.mxu0 0.0
    %1497 = vmatprep.subr.mxu0 0.0
    %1498 = vmatpush1.msra.mxu0 0.0
    %1499 = vmatprep.subr.mxu0 0.0
    %1500 = vmatpush1.msra.mxu0 0.0
    %1501 = vmatprep.subr.mxu0 0.0
    %1502 = vmatpush1.msra.mxu0 0.0
    %1503 = vmatprep.subr.mxu0 0.0
    %1504 = vmatpush1.msra.mxu0 0.0
    %1505 = vmatprep.subr.mxu0 0.0
    %1506 = vmatpush1.msra.mxu0 0.0
    %1507 = vmatprep.subr.mxu0 0.0
    %1508 = vmatpush1.msra.mxu0 0.0
    %1509 = vmatprep.subr.mxu0 0.0
    %1510 = vmatpush1.msra.mxu0 0.0
    %1511 = vmatprep.subr.mxu0 0.0
    %1512 = vmatpush1.msra.mxu0 0.0
    %1513 = vmatprep.subr.mxu0 0.0
    %1514 = vmatpush1.msra.mxu0 0.0
    %1515 = vmatprep.subr.mxu0 0.0
    %1516 = vmatpush1.msra.mxu0 0.0
    %1517 = vmatprep.subr.mxu0 0.0
    %1518 = vmatpush1.msra.mxu0 0.0
    %1519 = vmatprep.subr.mxu0 0.0
    %1520 = vmatpush1.msra.mxu0 %v1484
    %1521 = vmatprep.subr.mxu0 0.0
    %1522 = vmatpush2.msra.mxu0 0.0
    %1523 = vmatprep.subr.mxu0 0.0
    %1524 = vmatpush2.msra.mxu0 0.0
    %1525 = vmatprep.subr.mxu0 0.0
    %1526 = vmatpush2.msra.mxu0 0.0
    %1527 = vmatprep.subr.mxu0 0.0
    %1528 = vmatpush2.msra.mxu0 0.0
    %1529 = vmatprep.subr.mxu0 0.0
    %1530 = vmatpush2.msra.mxu0 0.0
    %1531 = vmatprep.subr.mxu0 0.0
    %1532 = vmatpush2.msra.mxu0 0.0
    %1533 = vmatprep.subr.mxu0 0.0
    %1534 = vmatpush2.msra.mxu0 0.0
    %1535 = vmatprep.subr.mxu0 0.0
    %1536 = vmatpush2.msra.mxu0 0.0
    %1537 = vmatprep.subr.mxu0 0.0
    %1538 = vmatpush2.msra.mxu0 0.0
    %1539 = vmatprep.subr.mxu0 0.0
    %1540 = vmatpush2.msra.mxu0 0.0
    %1541 = vmatprep.subr.mxu0 0.0
    %1542 = vmatpush2.msra.mxu0 0.0
    %1543 = vmatprep.subr.mxu0 0.0
    %1544 = vmatpush2.msra.mxu0 0.0
    %1545 = vmatprep.subr.mxu0 0.0
    %1546 = vmatpush2.msra.mxu0 0.0
    %1547 = vmatprep.subr.mxu0 0.0
    %1548 = vmatpush2.msra.mxu0 0.0
    %1549 = vmatprep.subr.mxu0 0.0
    %1550 = vmatpush2.msra.mxu0 0.0
    %1551 = vmatprep.subr.mxu0 0.0
    %1552 = vmatpush2.msra.mxu0 0.0
    %1553 = vmatprep.mubr.f32.mxu0 0.0
    %1554 = vmatmul.mubr.f32.gmra.mxu0 %v1487
    %v1555 = vpop.f32.mrf.mxu0
    %v1556 = vadd.f32 0.0, %v1555
    %v1557 = vpop.f32.mrf.mxu0
    %1558 = vdwg.mxu0
    %1560 = vrot.lane.b32.xlu0 %v1556, 16
    %v1561 = vpop.permute.xlu0 %1560
    %1563 = vst.msk [vmem:[#allocation2 + $0x8] sm:$0xff] %vm881, %v1561
    %1564 = vrot.lane.b32.xlu0 %v200, 104
    %v1565 = vpop.permute.xlu0 %1564
    %1566 = vrot.lane.b32.xlu0 %v284, 104
    %v1567 = vpop.permute.xlu0 %1566
    %v1568 = vsel %vm373, %v1565, 0
    %v1570 = vsel %vm373, %v1567, 0
    %1572 = vmatprep.subr.mxu0 0.0
    %1573 = vmatpush1.xpose.msra.mxu0 0.0
    %1574 = vmatprep.subr.mxu0 0.0
    %1575 = vmatpush1.xpose.msra.mxu0 0.0
    %1576 = vmatprep.subr.mxu0 0.0
    %1577 = vmatpush1.xpose.msra.mxu0 0.0
    %1578 = vmatprep.subr.mxu0 0.0
    %1579 = vmatpush1.xpose.msra.mxu0 0.0
    %1580 = vmatprep.subr.mxu0 0.0
    %1581 = vmatpush1.xpose.msra.mxu0 0.0
    %1582 = vmatprep.subr.mxu0 0.0
    %1583 = vmatpush1.xpose.msra.mxu0 0.0
    %1584 = vmatprep.subr.mxu0 0.0
    %1585 = vmatpush1.xpose.msra.mxu0 0.0
    %1586 = vmatprep.subr.mxu0 0.0
    %1587 = vmatpush1.xpose.msra.mxu0 0.0
    %1588 = vmatprep.subr.mxu0 0.0
    %1589 = vmatpush1.xpose.msra.mxu0 0.0
    %1590 = vmatprep.subr.mxu0 0.0
    %1591 = vmatpush1.xpose.msra.mxu0 0.0
    %1592 = vmatprep.subr.mxu0 0.0
    %1593 = vmatpush1.xpose.msra.mxu0 0.0
    %1594 = vmatprep.subr.mxu0 0.0
    %1595 = vmatpush1.xpose.msra.mxu0 0.0
    %1596 = vmatprep.subr.mxu0 0.0
    %1597 = vmatpush1.xpose.msra.mxu0 0.0
    %1598 = vmatprep.subr.mxu0 0.0
    %1599 = vmatpush1.xpose.msra.mxu0 0.0
    %1600 = vmatprep.subr.mxu0 0.0
    %1601 = vmatpush1.xpose.msra.mxu0 0.0
    %1602 = vmatprep.subr.mxu0 0.0
    %1603 = vmatpush1.xpose.msra.mxu0 %v1570
    %1604 = vmatprep.subr.mxu0 0.0
    %1605 = vmatpush2.xpose.msra.mxu0 0.0
    %1606 = vmatprep.subr.mxu0 0.0
    %1607 = vmatpush2.xpose.msra.mxu0 0.0
    %1608 = vmatprep.subr.mxu0 0.0
    %1609 = vmatpush2.xpose.msra.mxu0 0.0
    %1610 = vmatprep.subr.mxu0 0.0
    %1611 = vmatpush2.xpose.msra.mxu0 0.0
    %1612 = vmatprep.subr.mxu0 0.0
    %1613 = vmatpush2.xpose.msra.mxu0 0.0
    %1614 = vmatprep.subr.mxu0 0.0
    %1615 = vmatpush2.xpose.msra.mxu0 0.0
    %1616 = vmatprep.subr.mxu0 0.0
    %1617 = vmatpush2.xpose.msra.mxu0 0.0
    %1618 = vmatprep.subr.mxu0 0.0
    %1619 = vmatpush2.xpose.msra.mxu0 0.0
    %1620 = vmatprep.subr.mxu0 0.0
    %1621 = vmatpush2.xpose.msra.mxu0 0.0
    %1622 = vmatprep.subr.mxu0 0.0
    %1623 = vmatpush2.xpose.msra.mxu0 0.0
    %1624 = vmatprep.subr.mxu0 0.0
    %1625 = vmatpush2.xpose.msra.mxu0 0.0
    %1626 = vmatprep.subr.mxu0 0.0
    %1627 = vmatpush2.xpose.msra.mxu0 0.0
    %1628 = vmatprep.subr.mxu0 0.0
    %1629 = vmatpush2.xpose.msra.mxu0 0.0
    %1630 = vmatprep.subr.mxu0 0.0
    %1631 = vmatpush2.xpose.msra.mxu0 0.0
    %1632 = vmatprep.subr.mxu0 0.0
    %1633 = vmatpush2.xpose.msra.mxu0 0.0
    %1634 = vmatprep.subr.mxu0 0.0
    %1635 = vmatpush2.xpose.msra.mxu0 0.0
    %1636 = vmatprep.mubr.f32.mxu0 0.0
    %1637 = vmatmul.mubr.f32.gmra.mxu0 %v1568
    %v1638 = vpop.f32.mrf.mxu0
    %v1639 = vadd.f32 0.0, %v1638
    %v1640 = vpop.f32.mrf.mxu0
    %1641 = vdwg.mxu0
    %s1642 = scalar_lea.vmem [#allocation13], 56
    %1643 = vst.msk [vmem:[%s1642] sm:$0xff] %vm373, %v1639
    %v1644 = vsel %vm373, %v1639, -inf
    %1645 = vmax.xlane.f32.xlu0 %v1644
    %v1646 = vpop.xlane.xlu0 %1645
    %v1647 = vsub.f32 %v1639, %v1646
    %v1648 = vmul.f32 %v1647, 1.442695
    %v1649 = vpow.pop %v1648
    %v1650 = vsel %vm373, %v1649, 0.0
    %1651 = vadd.xlane.f32.xlu0 %v1650
    %v1652 = vpop.xlane.xlu0 %1651
    %v1653 = vrcp.pop %v1652
    %v1654 = vmul.f32 %v1649, %v1653
    %1655 = vrot.lane.b32.xlu0 %v370, 104
    %v1656 = vpop.permute.xlu0 %1655
    %v1659 = vsel %vm373, %v1654, 0
    %1661 = vmatprep.subr.mxu0 0.0
    %1662 = vmatpush1.msra.mxu0 0.0
    %1663 = vmatprep.subr.mxu0 0.0
    %1664 = vmatpush1.msra.mxu0 0.0
    %1665 = vmatprep.subr.mxu0 0.0
    %1666 = vmatpush1.msra.mxu0 0.0
    %1667 = vmatprep.subr.mxu0 0.0
    %1668 = vmatpush1.msra.mxu0 0.0
    %1669 = vmatprep.subr.mxu0 0.0
    %1670 = vmatpush1.msra.mxu0 0.0
    %1671 = vmatprep.subr.mxu0 0.0
    %1672 = vmatpush1.msra.mxu0 0.0
    %1673 = vmatprep.subr.mxu0 0.0
    %1674 = vmatpush1.msra.mxu0 0.0
    %1675 = vmatprep.subr.mxu0 0.0
    %1676 = vmatpush1.msra.mxu0 0.0
    %1677 = vmatprep.subr.mxu0 0.0
    %1678 = vmatpush1.msra.mxu0 0.0
    %1679 = vmatprep.subr.mxu0 0.0
    %1680 = vmatpush1.msra.mxu0 0.0
    %1681 = vmatprep.subr.mxu0 0.0
    %1682 = vmatpush1.msra.mxu0 0.0
    %1683 = vmatprep.subr.mxu0 0.0
    %1684 = vmatpush1.msra.mxu0 0.0
    %1685 = vmatprep.subr.mxu0 0.0
    %1686 = vmatpush1.msra.mxu0 0.0
    %1687 = vmatprep.subr.mxu0 0.0
    %1688 = vmatpush1.msra.mxu0 0.0
    %1689 = vmatprep.subr.mxu0 0.0
    %1690 = vmatpush1.msra.mxu0 0.0
    %1691 = vmatprep.subr.mxu0 0.0
    %1692 = vmatpush1.msra.mxu0 %v1656
    %1693 = vmatprep.subr.mxu0 0.0
    %1694 = vmatpush2.msra.mxu0 0.0
    %1695 = vmatprep.subr.mxu0 0.0
    %1696 = vmatpush2.msra.mxu0 0.0
    %1697 = vmatprep.subr.mxu0 0.0
    %1698 = vmatpush2.msra.mxu0 0.0
    %1699 = vmatprep.subr.mxu0 0.0
    %1700 = vmatpush2.msra.mxu0 0.0
    %1701 = vmatprep.subr.mxu0 0.0
    %1702 = vmatpush2.msra.mxu0 0.0
    %1703 = vmatprep.subr.mxu0 0.0
    %1704 = vmatpush2.msra.mxu0 0.0
    %1705 = vmatprep.subr.mxu0 0.0
    %1706 = vmatpush2.msra.mxu0 0.0
    %1707 = vmatprep.subr.mxu0 0.0
    %1708 = vmatpush2.msra.mxu0 0.0
    %1709 = vmatprep.subr.mxu0 0.0
    %1710 = vmatpush2.msra.mxu0 0.0
    %1711 = vmatprep.subr.mxu0 0.0
    %1712 = vmatpush2.msra.mxu0 0.0
    %1713 = vmatprep.subr.mxu0 0.0
    %1714 = vmatpush2.msra.mxu0 0.0
    %1715 = vmatprep.subr.mxu0 0.0
    %1716 = vmatpush2.msra.mxu0 0.0
    %1717 = vmatprep.subr.mxu0 0.0
    %1718 = vmatpush2.msra.mxu0 0.0
    %1719 = vmatprep.subr.mxu0 0.0
    %1720 = vmatpush2.msra.mxu0 0.0
    %1721 = vmatprep.subr.mxu0 0.0
    %1722 = vmatpush2.msra.mxu0 0.0
    %1723 = vmatprep.subr.mxu0 0.0
    %1724 = vmatpush2.msra.mxu0 0.0
    %1725 = vmatprep.mubr.f32.mxu0 0.0
    %1726 = vmatmul.mubr.f32.gmra.mxu0 %v1659
    %v1727 = vpop.f32.mrf.mxu0
    %v1728 = vadd.f32 0.0, %v1727
    %v1729 = vpop.f32.mrf.mxu0
    %1730 = vdwg.mxu0
    %1732 = vrot.lane.b32.xlu0 %v1728, 24
    %v1733 = vpop.permute.xlu0 %1732
    %1735 = vst.msk [vmem:[#allocation2 + $0x8] sm:$0xff] %vm1054, %v1733
    %v1736 = vld [vmem:[#allocation2] sm:$0xff]
    %v1737 = vld [vmem:[#allocation2 + $0x8] sm:$0xff]
    %v1738 = vld [vmem:[#allocation11] sm:$0xff]
    %v1739 = vld [vmem:[#allocation11 + $0x8] sm:$0xff]
    %v1740 = vld [vmem:[#allocation11 + $0x10] sm:$0xff]
    %v1741 = vld [vmem:[#allocation11 + $0x18] sm:$0xff]
    %v1742 = vld [vmem:[%s8] sm:$0x1]
    %v1744 = vlaneseq
    %v1745 = vshrl.u32 %v1744, 7
    %v1746 = vsub.s32 0, %v1745
    %v1747 = vrot.slane %v1742, %v1746
    %v1750 = vsel %vm117, %v1736, 0
    %v1753 = vsel %vm117, %v1737, 0
    %1755 = vmatprep.subr.mxu0 0.0
    %1756 = vmatpush1.msra.mxu0 0.0
    %1757 = vmatprep.subr.mxu0 0.0
    %1758 = vmatpush1.msra.mxu0 0.0
    %1759 = vmatprep.subr.mxu0 0.0
    %1760 = vmatpush1.msra.mxu0 0.0
    %1761 = vmatprep.subr.mxu0 0.0
    %1762 = vmatpush1.msra.mxu0 0.0
    %1763 = vmatprep.subr.mxu0 0.0
    %1764 = vmatpush1.msra.mxu0 0.0
    %1765 = vmatprep.subr.mxu0 0.0
    %1766 = vmatpush1.msra.mxu0 0.0
    %1767 = vmatprep.subr.mxu0 0.0
    %1768 = vmatpush1.msra.mxu0 0.0
    %1769 = vmatprep.subr.mxu0 0.0
    %1770 = vmatpush1.msra.mxu0 0.0
    %1771 = vmatprep.subr.mxu0 0.0
    %1772 = vmatpush1.msra.mxu0 0.0
    %1773 = vmatprep.subr.mxu0 0.0
    %1774 = vmatpush1.msra.mxu0 0.0
    %1775 = vmatprep.subr.mxu0 0.0
    %1776 = vmatpush1.msra.mxu0 0.0
    %1777 = vmatprep.subr.mxu0 0.0
    %1778 = vmatpush1.msra.mxu0 0.0
    %1779 = vmatprep.subr.mxu0 0.0
    %1780 = vmatpush1.msra.mxu0 %v1741
    %1781 = vmatprep.subr.mxu0 0.0
    %1782 = vmatpush1.msra.mxu0 %v1740
    %1783 = vmatprep.subr.mxu0 0.0
    %1784 = vmatpush1.msra.mxu0 %v1739
    %1785 = vmatprep.subr.mxu0 0.0
    %1786 = vmatpush1.msra.mxu0 %v1738
    %1787 = vmatprep.subr.mxu0 0.0
    %1788 = vmatpush2.msra.mxu0 0.0
    %1789 = vmatprep.subr.mxu0 0.0
    %1790 = vmatpush2.msra.mxu0 0.0
    %1791 = vmatprep.subr.mxu0 0.0
    %1792 = vmatpush2.msra.mxu0 0.0
    %1793 = vmatprep.subr.mxu0 0.0
    %1794 = vmatpush2.msra.mxu0 0.0
    %1795 = vmatprep.subr.mxu0 0.0
    %1796 = vmatpush2.msra.mxu0 0.0
    %1797 = vmatprep.subr.mxu0 0.0
    %1798 = vmatpush2.msra.mxu0 0.0
    %1799 = vmatprep.subr.mxu0 0.0
    %1800 = vmatpush2.msra.mxu0 0.0
    %1801 = vmatprep.subr.mxu0 0.0
    %1802 = vmatpush2.msra.mxu0 0.0
    %1803 = vmatprep.subr.mxu0 0.0
    %1804 = vmatpush2.msra.mxu0 0.0
    %1805 = vmatprep.subr.mxu0 0.0
    %1806 = vmatpush2.msra.mxu0 0.0
    %1807 = vmatprep.subr.mxu0 0.0
    %1808 = vmatpush2.msra.mxu0 0.0
    %1809 = vmatprep.subr.mxu0 0.0
    %1810 = vmatpush2.msra.mxu0 0.0
    %1811 = vmatprep.subr.mxu0 0.0
    %1812 = vmatpush2.msra.mxu0 0.0
    %1813 = vmatprep.subr.mxu0 0.0
    %1814 = vmatpush2.msra.mxu0 0.0
    %1815 = vmatprep.subr.mxu0 0.0
    %1816 = vmatpush2.msra.mxu0 0.0
    %1817 = vmatprep.subr.mxu0 0.0
    %1818 = vmatpush2.msra.mxu0 0.0
    %1819 = vmatprep.mubr.f32.mxu0 0.0
    %1820 = vmatmul.mubr.f32.gmra.mxu0 %v1750
    %v1821 = vpop.f32.mrf.mxu0
    %v1822 = vadd.f32 %v1747, %v1821
    %v1823 = vpop.f32.mrf.mxu0
    %1824 = vmatprep.mubr.f32.mxu0 0.0
    %1825 = vmatmul.mubr.f32.gmra.mxu0 %v1753
    %v1826 = vpop.f32.mrf.mxu0
    %v1827 = vadd.f32 %v1747, %v1826
    %v1828 = vpop.f32.mrf.mxu0
    %1829 = vdwg.mxu0
    %1830 = vst.msk [vmem:[#allocation12] sm:$0xff] %vm117, %v1822
    %1831 = vst.msk [vmem:[#allocation12 + $0x8] sm:$0xff] %vm117, %v1827
    // Predicated region
    $region58: #{tpu_custom_call.1} parent=1 // pred_check
      _
    $region59: #{tpu_custom_call.1} parent=1 // pred_check_branch
      %1833 = sbr.rel (0) target = $region61
    $region60: #{tpu_custom_call.1} parent=1 // pred_region
      %s1835 = ssub.s32 256, 256
      %1836 = vsyncadd [#allocation5], %s1835
      %s1837 = sshll.u32 [#allocation12], 4
      %s1838 = int_to_ptr.vmem [resolvable:$true] %s1837
      %1843 = dma.vmem_to_hbm [thread:$0]  %s1838, 256, %s9, [#allocation5], 128, 128, 8
    $region61: #{tpu_custom_call.1} parent=1 // pred_fallthru
      _
    // Predicated region
    $region62: #{tpu_custom_call.1} parent=1 // pred_check
      _
    $region63: #{tpu_custom_call.1} parent=1 // pred_check_branch
      %1845 = sbr.rel (0) target = $region65
    $region64: #{tpu_custom_call.1} parent=1 // pred_region
      %s1847 = ssub.s32 1024, 1024
      %1848 = vsyncadd [#allocation14], %s1847
      %s1849 = sshll.u32 [#allocation13], 4
      %s1850 = int_to_ptr.vmem [resolvable:$true] %s1849
      %1855 = dma.vmem_to_hbm [thread:$0]  %s1850, 1024, %s10, [#allocation14], 128, 128, 8
    $region65: #{tpu_custom_call.1} parent=1 // pred_fallthru
      _
    // Predicated region
    $region66: #{tpu_custom_call.1} parent=1 // pred_check
      _
    $region67: #{tpu_custom_call.1} parent=1 // pred_check_branch
      %1857 = sbr.rel (0) target = $region69
    $region68: #{tpu_custom_call.1} parent=1 // pred_region
      %1858 = dma.done [#allocation5], 256
    $region69: #{tpu_custom_call.1} parent=1 // pred_fallthru
      _
    // Predicated region
    $region70: #{tpu_custom_call.1} parent=1 // pred_check
      _
    $region71: #{tpu_custom_call.1} parent=1 // pred_check_branch
      %1860 = sbr.rel (0) target = $region73
    $region72: #{tpu_custom_call.1} parent=1 // pred_region
      %1861 = dma.done [#allocation14], 1024
    $region73: #{tpu_custom_call.1} parent=1 // pred_fallthru
      _
    %1862 = vsyncpa [#allocation4], 1
    %1863 = vsyncpa [#allocation7], 1
    %1864 = vsyncpa [#allocation10], 1
    %1865 = vsyncpa [#allocation5], 1
    %1866 = vsyncpa [#allocation14], 1

</llo_original>
